<compile_context>
chip_gen: v7x
topology: tpu7x:2x2x1
jax: 0.10.0
libtpu: 0.0.40
codegen_flags: <defaults>
</compile_context>

<pallas_src>
import jax
import jax.numpy as jnp
from jax.experimental import pallas as pl
from jax.experimental.pallas import tpu as pltpu


# ------------------------- model hyper-parameters ---------------------------
B = 2                 # batch
S = 8                 # number of backbone tokens (seq)
D_MODEL = 768         # d_model
BBOX_EMB_DIM = 256
BBOX_INP_SIZE = 700
PROJ_DIM = 512
HEAD_HIDDEN = 256
TRANS_OUT = 3
ROT_OUT = 6
OUT_PAD = 8           # layer-3 weights / biases zero-padded to 8 lanes

# packed int8 slab layout (per branch): rows
#   [0    : 768 ]  proj weight, output cols   0:256
#   [768  : 1536]  proj weight, output cols 256:512
#   [1536 : 2048]  MLP hidden layer 1 (512 -> 256)
#   [2048 : 2304]  MLP hidden layer 2 (256 -> 256)
WQ_ROWS = 2304


# ------------------------------- kernel -------------------------------------
def double_direct_kernel(
    lhs_ref,     # (B, 1024)      bf16  [pooled(768) || bbox_emb(256)]
    wq_ref,      # (2304, 256)    int8  branch-i quantized weight slab
    wtpb_ref,    # (256, 512)     int8  bbox slab of fc_trans_proj (shared, fetched once)
    sb_ref,      # (8, 512)       f32   branch-i scales + biases (see init_params)
    wout_ref,    # (256, 8)       bf16  branch-i output layer (zero-padded lanes)
    out_ref,     # (B, 128)       f32   branch-i 128-lane output block
):
  f32, bf16 = jnp.float32, jnp.bfloat16

  lhs = lhs_ref[...]                               # (B, 1024) bf16
  pooled = lhs[:, 0:D_MODEL]                       # (B, 768)
  bbox = lhs[:, D_MODEL:D_MODEL + BBOX_EMB_DIM]    # (B, 256)

  sb = sb_ref[...]                                 # (8, 512) f32
  s_proj, b_proj = sb[0:1, :], sb[1:2, :]
  s_h, b_h = sb[2:3, :], sb[3:4, :]
  b3 = sb[4:5, 0:OUT_PAD]                          # (1, 8)
  s_tpb = sb[5:6, :]                               # all-zero for the rot branch

  # Projection Linear(768 -> 512): two 256-wide dots over the int8 slab,
  # dequantized per output channel after the f32 accumulation.
  p_lo = jnp.dot(pooled, wq_ref[0:768, :].astype(bf16),
                 preferred_element_type=f32)                       # (B, 256)
  p_hi = jnp.dot(pooled, wq_ref[768:1536, :].astype(bf16),
                 preferred_element_type=f32)                       # (B, 256)
  proj = jnp.concatenate([p_lo, p_hi], axis=1) * s_proj + b_proj   # (B, 512)

  # bbox contribution of fc_trans_proj. s_tpb is identically zero for the rot
  # branch, so this term vanishes there (no control flow needed).
  bterm = jnp.dot(bbox, wtpb_ref[...].astype(bf16),
                  preferred_element_type=f32) * s_tpb
  x = proj + bterm                                                 # (B, 512) f32

  # MLP(512, 256, k, num_layers=3): Linear->ReLU->Linear->ReLU->Linear.
  h = jnp.dot(x.astype(bf16), wq_ref[1536:2048, :].astype(bf16),
              preferred_element_type=f32)
  h = jnp.maximum(h * s_h[:, 0:256] + b_h[:, 0:256], 0.0)          # (B, 256)
  h = jnp.dot(h.astype(bf16), wq_ref[2048:2304, :].astype(bf16),
              preferred_element_type=f32)
  h = jnp.maximum(h * s_h[:, 256:512] + b_h[:, 256:512], 0.0)      # (B, 256)

  # Output layer (256 -> {3, 6}), bf16 x bf16, padded to 8 lanes.
  o = jnp.dot(h.astype(bf16), wout_ref[...],
              preferred_element_type=f32) + b3                     # (B, 8)

  out_ref[...] = jnp.zeros(out_ref.shape, out_ref.dtype)
  out_ref[:, 0:OUT_PAD] = o.astype(out_ref.dtype)


# ------------------------------- wrapper -------------------------------------
@jax.jit
def double_direct_forward(features, bbox, params):
  """features: (B, S, D) f32 backbone tokens; bbox: (B, 1, 4) int32 coords."""
  b = features.shape[0]

  # AdaptiveAvgPool1d(1) over tokens (done here so it fuses with the backbone
  # epilogue in XLA and the kernel DMAs 4 KB instead of 49 KB).
  pooled = jnp.mean(features, axis=1)                              # (B, 768)
  # BoundingBoxEmbeddingCombined: sum of 4 embedding lookups == 8-row gather.
  bbox_sq = bbox.reshape(b, 4)
  bbox_emb = jnp.take(params["emb_tbl"], bbox_sq, axis=0).sum(axis=1)  # (B, 256)
  lhs = jnp.concatenate([pooled, bbox_emb], axis=1).astype(jnp.bfloat16)  # (B, 1024)

  out = pl.pallas_call(
      double_direct_kernel,
      out_shape=jax.ShapeDtypeStruct((b, 2 * 128), jnp.float32),
      grid_spec=pltpu.PrefetchScalarGridSpec(
          num_scalar_prefetch=0,
          grid=(2,),  # step 0 = translation branch, step 1 = rotation branch
          in_specs=[
              pl.BlockSpec((b, 1024), lambda i: (0, 0)),            # fetched once
              pl.BlockSpec((None, WQ_ROWS, 256), lambda i: (i, 0, 0)),
              pl.BlockSpec((BBOX_EMB_DIM, PROJ_DIM), lambda i: (0, 0)),  # once
              pl.BlockSpec((None, 8, 512), lambda i: (i, 0, 0)),
              pl.BlockSpec((None, HEAD_HIDDEN, OUT_PAD), lambda i: (i, 0, 0)),
          ],
          out_specs=pl.BlockSpec((b, 128), lambda i: (0, i)),
      ),
      compiler_params=pltpu.CompilerParams(
          dimension_semantics=("arbitrary",),
          vmem_limit_bytes=6 << 20,
      ),
  )(lhs, params["wq"], params["wtpb"], params["sb"], params["w_out"])

  trans = out[:, 0:TRANS_OUT]
  rot = out[:, 128:128 + ROT_OUT]
  return rot, trans


# ------------------------------- params --------------------------------------
def init_params(key):
  ks = jax.random.split(key, 18)

  def lin_w(k, fi, fo):
    s = 1.0 / jnp.sqrt(fi)
    return jax.random.uniform(k, (fi, fo), jnp.float32, -s, s)

  def lin_b(k, fi, fo):
    s = 1.0 / jnp.sqrt(fi)
    return jax.random.uniform(k, (fo,), jnp.float32, -s, s)

  emb_tbl = jax.random.normal(ks[0], (BBOX_INP_SIZE, BBOX_EMB_DIM),
                              jnp.float32) * 0.02

  # fc_trans_proj: Linear(768 + 256, 512), split into feature / bbox slabs.
  w_tpf = lin_w(ks[1], D_MODEL, PROJ_DIM)
  w_tpb = lin_w(ks[2], BBOX_EMB_DIM, PROJ_DIM)
  b_tp = lin_b(ks[3], D_MODEL + BBOX_EMB_DIM, PROJ_DIM)
  # fc_rot_proj: Linear(768, 512)
  w_rp = lin_w(ks[4], D_MODEL, PROJ_DIM)
  b_rp = lin_b(ks[5], D_MODEL, PROJ_DIM)
  # trans_head: MLP(512, 256, 3, num_layers=3)
  wt1, bt1 = lin_w(ks[6], PROJ_DIM, HEAD_HIDDEN), lin_b(ks[7], PROJ_DIM, HEAD_HIDDEN)
  wt2, bt2 = lin_w(ks[8], HEAD_HIDDEN, HEAD_HIDDEN), lin_b(ks[9], HEAD_HIDDEN, HEAD_HIDDEN)
  wt3, bt3 = lin_w(ks[10], HEAD_HIDDEN, TRANS_OUT), lin_b(ks[11], HEAD_HIDDEN, TRANS_OUT)
  # rot_head: MLP(512, 256, 6, num_layers=3)
  wr1, br1 = lin_w(ks[12], PROJ_DIM, HEAD_HIDDEN), lin_b(ks[13], PROJ_DIM, HEAD_HIDDEN)
  wr2, br2 = lin_w(ks[14], HEAD_HIDDEN, HEAD_HIDDEN), lin_b(ks[15], HEAD_HIDDEN, HEAD_HIDDEN)
  wr3, br3 = lin_w(ks[16], HEAD_HIDDEN, ROT_OUT), lin_b(ks[17], HEAD_HIDDEN, ROT_OUT)

  # ---- symmetric per-output-channel int8 quantization ------------------------
  def quant(w):
    s = jnp.maximum(jnp.max(jnp.abs(w), axis=0), 1e-8) / 127.0
    q = jnp.clip(jnp.round(w / s), -127, 127).astype(jnp.int8)
    return q, s

  q_tpf, s_tpf = quant(w_tpf)
  q_rp, s_rp = quant(w_rp)
  q_tpb, s_tpb = quant(w_tpb)
  q_t1, s_t1 = quant(wt1)
  q_t2, s_t2 = quant(wt2)
  q_r1, s_r1 = quant(wr1)
  q_r2, s_r2 = quant(wr2)

  # ---- branch-indexed int8 weight slab (zero packing waste) ------------------
  wq = jnp.zeros((2, WQ_ROWS, 256), jnp.int8)
  # branch 0: translation
  wq = wq.at[0, 0:768, :].set(q_tpf[:, 0:256])
  wq = wq.at[0, 768:1536, :].set(q_tpf[:, 256:512])
  wq = wq.at[0, 1536:2048, :].set(q_t1)
  wq = wq.at[0, 2048:2304, :].set(q_t2)
  # branch 1: rotation
  wq = wq.at[1, 0:768, :].set(q_rp[:, 0:256])
  wq = wq.at[1, 768:1536, :].set(q_rp[:, 256:512])
  wq = wq.at[1, 1536:2048, :].set(q_r1)
  wq = wq.at[1, 2048:2304, :].set(q_r2)

  # ---- branch-indexed scales + biases (f32, (2, 8, 512)) ---------------------
  sb = jnp.zeros((2, 8, 512), jnp.float32)
  sb = sb.at[0, 0, :].set(s_tpf).at[0, 1, :].set(b_tp)
  sb = sb.at[0, 2, 0:256].set(s_t1).at[0, 2, 256:512].set(s_t2)
  sb = sb.at[0, 3, 0:256].set(bt1).at[0, 3, 256:512].set(bt2)
  sb = sb.at[0, 4, 0:TRANS_OUT].set(bt3)
  sb = sb.at[0, 5, :].set(s_tpb)                       # bbox-slab scale
  sb = sb.at[1, 0, :].set(s_rp).at[1, 1, :].set(b_rp)
  sb = sb.at[1, 2, 0:256].set(s_r1).at[1, 2, 256:512].set(s_r2)
  sb = sb.at[1, 3, 0:256].set(br1).at[1, 3, 256:512].set(br2)
  sb = sb.at[1, 4, 0:ROT_OUT].set(br3)
  # sb[1, 5, :] stays zero -> bbox term vanishes for the rot branch.

  # ---- branch-indexed output layer, bf16, padded to 8 lanes ------------------
  w_out = jnp.zeros((2, HEAD_HIDDEN, OUT_PAD), jnp.float32)
  w_out = w_out.at[0, :, 0:TRANS_OUT].set(wt3)
  w_out = w_out.at[1, :, 0:ROT_OUT].set(wr3)
  w_out = w_out.astype(jnp.bfloat16)

  return {
      "emb_tbl": emb_tbl,                 # stays in HBM; wrapper gathers 4 rows / sample
      "wq": wq,                           # (2, 2304, 256) int8
      "wtpb": q_tpb,                      # (256, 512) int8
      "sb": sb,                           # (2, 8, 512) f32
      "w_out": w_out,                     # (2, 256, 8) bf16
  }


if __name__ == "__main__":
  key = jax.random.PRNGKey(0)
  k_feat, k_bbox, k_par = jax.random.split(key, 3)

  # Backbone output (the backbones themselves are external modules and are
  # not part of this head kernel).
  features = jax.random.normal(k_feat, (B, S, D_MODEL), jnp.float32)
  # bbox: (B, 1, 4) integer pixel coords in [0, bbox_emb_inp_size)
  bbox = jax.random.randint(k_bbox, (B, 1, 4), 0, BBOX_INP_SIZE, jnp.int32)

  params = init_params(k_par)

  rot, trans = double_direct_forward(features, bbox, params)
  jax.block_until_ready((rot, trans))

  assert rot.shape == (B, ROT_OUT) and trans.shape == (B, TRANS_OUT)
  assert jnp.all(jnp.isfinite(rot)) and jnp.all(jnp.isfinite(trans))
  print("KERNEL_OK")
</pallas_src>

<mosaic_0001>
module attributes {stable_mosaic.version = 11 : i64} {
  func.func @double_direct_kernel(%arg0: i32, %arg1: memref<2x1024xbf16, #tpu.memory_space<vmem>>, %arg2: memref<1x2304x256xi8, #tpu.memory_space<vmem>>, %arg3: memref<256x512xi8, #tpu.memory_space<vmem>>, %arg4: memref<1x8x512xf32, #tpu.memory_space<vmem>>, %arg5: memref<1x256x8xbf16, #tpu.memory_space<vmem>>, %arg6: memref<2x128xf32, #tpu.memory_space<vmem>>) attributes {dimension_semantics = [#tpu.dimension_semantics<arbitrary>], iteration_bounds = array<i64: 2>, scalar_prefetch = 0 : i64, scratch_operands = 0 : i64, tpu.core_type = #tpu.core_type<tc>, window_params = [{pipeline_mode = #tpu.pipeline_mode<synchronous>, transform_indices = @transform_0, window_bounds = array<i64: 2, 1024>}, {transform_indices = @transform_1, window_bounds = array<i64: 1, 2304, 256>}, {pipeline_mode = #tpu.pipeline_mode<synchronous>, transform_indices = @transform_2, window_bounds = array<i64: 256, 512>}, {transform_indices = @transform_3, window_bounds = array<i64: 1, 8, 512>}, {transform_indices = @transform_4, window_bounds = array<i64: 1, 256, 8>}, {transform_indices = @transform_5, window_bounds = array<i64: 2, 128>}]} {
    %c0 = arith.constant 0 : index
    %c0_0 = arith.constant 0 : index
    %0 = vector.load %arg1[%c0, %c0_0] : memref<2x1024xbf16, #tpu.memory_space<vmem>>, vector<2x1024xbf16>
    %1 = vector.extract_strided_slice %0 {offsets = [0, 0], sizes = [2, 768], strides = [1, 1]} : vector<2x1024xbf16> to vector<2x768xbf16>
    %2 = vector.extract_strided_slice %0 {offsets = [0, 768], sizes = [2, 256], strides = [1, 1]} : vector<2x1024xbf16> to vector<2x256xbf16>
    %c0_1 = arith.constant 0 : index
    %c0_2 = arith.constant 0 : index
    %c0_3 = arith.constant 0 : index
    %3 = vector.load %arg4[%c0_1, %c0_2, %c0_3] : memref<1x8x512xf32, #tpu.memory_space<vmem>>, vector<1x8x512xf32>
    %4 = vector.shape_cast %3 : vector<1x8x512xf32> to vector<8x512xf32>
    %5 = vector.extract_strided_slice %4 {offsets = [0, 0], sizes = [1, 512], strides = [1, 1]} : vector<8x512xf32> to vector<1x512xf32>
    %6 = vector.extract_strided_slice %4 {offsets = [1, 0], sizes = [1, 512], strides = [1, 1]} : vector<8x512xf32> to vector<1x512xf32>
    %7 = vector.extract_strided_slice %4 {offsets = [2, 0], sizes = [1, 512], strides = [1, 1]} : vector<8x512xf32> to vector<1x512xf32>
    %8 = vector.extract_strided_slice %4 {offsets = [3, 0], sizes = [1, 512], strides = [1, 1]} : vector<8x512xf32> to vector<1x512xf32>
    %9 = vector.extract_strided_slice %4 {offsets = [4, 0], sizes = [1, 8], strides = [1, 1]} : vector<8x512xf32> to vector<1x8xf32>
    %10 = vector.extract_strided_slice %4 {offsets = [5, 0], sizes = [1, 512], strides = [1, 1]} : vector<8x512xf32> to vector<1x512xf32>
    %c0_4 = arith.constant 0 : index
    %c0_5 = arith.constant 0 : index
    %c0_6 = arith.constant 0 : index
    %11 = vector.load %arg2[%c0_4, %c0_5, %c0_6] : memref<1x2304x256xi8, #tpu.memory_space<vmem>>, vector<1x768x256xi8>
    %12 = vector.shape_cast %11 : vector<1x768x256xi8> to vector<768x256xi8>
    %13 = arith.sitofp %12 : vector<768x256xi8> to vector<768x256xbf16>
    %cst = arith.constant dense<0.000000e+00> : vector<2x256xf32>
    %14 = tpu.matmul %1, %13, %cst {dimension_numbers = #tpu.dot_dimension_numbers<[1], [0], [0], [1], [0, 0, 1, 1], [], []>} : vector<2x768xbf16>, vector<768x256xbf16>, vector<2x256xf32> -> vector<2x256xf32>
    %c0_7 = arith.constant 0 : index
    %c768 = arith.constant 768 : index
    %c0_8 = arith.constant 0 : index
    %15 = vector.load %arg2[%c0_7, %c768, %c0_8] : memref<1x2304x256xi8, #tpu.memory_space<vmem>>, vector<1x768x256xi8>
    %16 = vector.shape_cast %15 : vector<1x768x256xi8> to vector<768x256xi8>
    %17 = arith.sitofp %16 : vector<768x256xi8> to vector<768x256xbf16>
    %cst_9 = arith.constant dense<0.000000e+00> : vector<2x256xf32>
    %18 = tpu.matmul %1, %17, %cst_9 {dimension_numbers = #tpu.dot_dimension_numbers<[1], [0], [0], [1], [0, 0, 1, 1], [], []>} : vector<2x768xbf16>, vector<768x256xbf16>, vector<2x256xf32> -> vector<2x256xf32>
    %19 = tpu.concatenate %14, %18 in 1 : vector<2x256xf32>, vector<2x256xf32> -> vector<2x512xf32>
    %20 = vector.broadcast %5 : vector<1x512xf32> to vector<2x512xf32>
    %21 = arith.mulf %19, %20 : vector<2x512xf32>
    %22 = vector.broadcast %6 : vector<1x512xf32> to vector<2x512xf32>
    %23 = arith.addf %21, %22 : vector<2x512xf32>
    %c0_10 = arith.constant 0 : index
    %c0_11 = arith.constant 0 : index
    %24 = vector.load %arg3[%c0_10, %c0_11] : memref<256x512xi8, #tpu.memory_space<vmem>>, vector<256x512xi8>
    %25 = arith.sitofp %24 : vector<256x512xi8> to vector<256x512xbf16>
    %cst_12 = arith.constant dense<0.000000e+00> : vector<2x512xf32>
    %26 = tpu.matmul %2, %25, %cst_12 {dimension_numbers = #tpu.dot_dimension_numbers<[1], [0], [0], [1], [0, 0, 1, 1], [], []>} : vector<2x256xbf16>, vector<256x512xbf16>, vector<2x512xf32> -> vector<2x512xf32>
    %27 = vector.broadcast %10 : vector<1x512xf32> to vector<2x512xf32>
    %28 = arith.mulf %26, %27 : vector<2x512xf32>
    %29 = arith.addf %23, %28 : vector<2x512xf32>
    %30 = arith.truncf %29 : vector<2x512xf32> to vector<2x512xbf16>
    %c0_13 = arith.constant 0 : index
    %c1536 = arith.constant 1536 : index
    %c0_14 = arith.constant 0 : index
    %31 = vector.load %arg2[%c0_13, %c1536, %c0_14] : memref<1x2304x256xi8, #tpu.memory_space<vmem>>, vector<1x512x256xi8>
    %32 = vector.shape_cast %31 : vector<1x512x256xi8> to vector<512x256xi8>
    %33 = arith.sitofp %32 : vector<512x256xi8> to vector<512x256xbf16>
    %cst_15 = arith.constant dense<0.000000e+00> : vector<2x256xf32>
    %34 = tpu.matmul %30, %33, %cst_15 {dimension_numbers = #tpu.dot_dimension_numbers<[1], [0], [0], [1], [0, 0, 1, 1], [], []>} : vector<2x512xbf16>, vector<512x256xbf16>, vector<2x256xf32> -> vector<2x256xf32>
    %35 = vector.extract_strided_slice %7 {offsets = [0, 0], sizes = [1, 256], strides = [1, 1]} : vector<1x512xf32> to vector<1x256xf32>
    %36 = vector.broadcast %35 : vector<1x256xf32> to vector<2x256xf32>
    %37 = arith.mulf %34, %36 : vector<2x256xf32>
    %38 = vector.extract_strided_slice %8 {offsets = [0, 0], sizes = [1, 256], strides = [1, 1]} : vector<1x512xf32> to vector<1x256xf32>
    %39 = vector.broadcast %38 : vector<1x256xf32> to vector<2x256xf32>
    %40 = arith.addf %37, %39 : vector<2x256xf32>
    %cst_16 = arith.constant 0.000000e+00 : f32
    %41 = vector.broadcast %cst_16 : f32 to vector<2x256xf32>
    %42 = arith.maximumf %40, %41 : vector<2x256xf32>
    %43 = arith.truncf %42 : vector<2x256xf32> to vector<2x256xbf16>
    %c0_17 = arith.constant 0 : index
    %c2048 = arith.constant 2048 : index
    %c0_18 = arith.constant 0 : index
    %44 = vector.load %arg2[%c0_17, %c2048, %c0_18] : memref<1x2304x256xi8, #tpu.memory_space<vmem>>, vector<1x256x256xi8>
    %45 = vector.shape_cast %44 : vector<1x256x256xi8> to vector<256x256xi8>
    %46 = arith.sitofp %45 : vector<256x256xi8> to vector<256x256xbf16>
    %cst_19 = arith.constant dense<0.000000e+00> : vector<2x256xf32>
    %47 = tpu.matmul %43, %46, %cst_19 {dimension_numbers = #tpu.dot_dimension_numbers<[1], [0], [0], [1], [0, 0, 1, 1], [], []>} : vector<2x256xbf16>, vector<256x256xbf16>, vector<2x256xf32> -> vector<2x256xf32>
    %48 = vector.extract_strided_slice %7 {offsets = [0, 256], sizes = [1, 256], strides = [1, 1]} : vector<1x512xf32> to vector<1x256xf32>
    %49 = vector.broadcast %48 : vector<1x256xf32> to vector<2x256xf32>
    %50 = arith.mulf %47, %49 : vector<2x256xf32>
    %51 = vector.extract_strided_slice %8 {offsets = [0, 256], sizes = [1, 256], strides = [1, 1]} : vector<1x512xf32> to vector<1x256xf32>
    %52 = vector.broadcast %51 : vector<1x256xf32> to vector<2x256xf32>
    %53 = arith.addf %50, %52 : vector<2x256xf32>
    %cst_20 = arith.constant 0.000000e+00 : f32
    %54 = vector.broadcast %cst_20 : f32 to vector<2x256xf32>
    %55 = arith.maximumf %53, %54 : vector<2x256xf32>
    %56 = arith.truncf %55 : vector<2x256xf32> to vector<2x256xbf16>
    %c0_21 = arith.constant 0 : index
    %c0_22 = arith.constant 0 : index
    %c0_23 = arith.constant 0 : index
    %57 = vector.load %arg5[%c0_21, %c0_22, %c0_23] : memref<1x256x8xbf16, #tpu.memory_space<vmem>>, vector<1x256x8xbf16>
    %58 = vector.shape_cast %57 : vector<1x256x8xbf16> to vector<256x8xbf16>
    %cst_24 = arith.constant dense<0.000000e+00> : vector<2x8xf32>
    %59 = tpu.matmul %56, %58, %cst_24 {dimension_numbers = #tpu.dot_dimension_numbers<[1], [0], [0], [1], [0, 0, 1, 1], [], []>} : vector<2x256xbf16>, vector<256x8xbf16>, vector<2x8xf32> -> vector<2x8xf32>
    %60 = vector.broadcast %9 : vector<1x8xf32> to vector<2x8xf32>
    %61 = arith.addf %59, %60 : vector<2x8xf32>
    %cst_25 = arith.constant 0.000000e+00 : f32
    %62 = vector.broadcast %cst_25 : f32 to vector<2x128xf32>
    %c0_26 = arith.constant 0 : index
    %c0_27 = arith.constant 0 : index
    %63 = vector.load %arg6[%c0_26, %c0_27] : memref<2x128xf32, #tpu.memory_space<vmem>>, vector<2x128xf32>
    tpu.vector_store %arg6[%c0_26, %c0_27], %62 {strides = array<i32>} : memref<2x128xf32, #tpu.memory_space<vmem>>, vector<2x128xf32>,
    %c0_28 = arith.constant 0 : index
    %c0_29 = arith.constant 0 : index
    %64 = vector.load %arg6[%c0_28, %c0_29] : memref<2x128xf32, #tpu.memory_space<vmem>>, vector<2x8xf32>
    tpu.vector_store %arg6[%c0_28, %c0_29], %61 {strides = array<i32>} : memref<2x128xf32, #tpu.memory_space<vmem>>, vector<2x8xf32>,
    return
  }
  func.func @transform_0(%arg0: i32) -> (i32, i32) {
    %c0_i32 = arith.constant 0 : i32
    %c0_i32_0 = arith.constant 0 : i32
    %c0_i32_1 = arith.constant 0 : i32
    return %c0_i32, %c0_i32_0 : i32, i32
  }
  func.func @transform_1(%arg0: i32) -> (i32, i32, i32) {
    %c0_i32 = arith.constant 0 : i32
    %c0_i32_0 = arith.constant 0 : i32
    %c0_i32_1 = arith.constant 0 : i32
    return %arg0, %c0_i32, %c0_i32_0 : i32, i32, i32
  }
  func.func @transform_2(%arg0: i32) -> (i32, i32) {
    %c0_i32 = arith.constant 0 : i32
    %c0_i32_0 = arith.constant 0 : i32
    %c0_i32_1 = arith.constant 0 : i32
    return %c0_i32, %c0_i32_0 : i32, i32
  }
  func.func @transform_3(%arg0: i32) -> (i32, i32, i32) {
    %c0_i32 = arith.constant 0 : i32
    %c0_i32_0 = arith.constant 0 : i32
    %c0_i32_1 = arith.constant 0 : i32
    return %arg0, %c0_i32, %c0_i32_0 : i32, i32, i32
  }
  func.func @transform_4(%arg0: i32) -> (i32, i32, i32) {
    %c0_i32 = arith.constant 0 : i32
    %c0_i32_0 = arith.constant 0 : i32
    %c0_i32_1 = arith.constant 0 : i32
    return %arg0, %c0_i32, %c0_i32_0 : i32, i32, i32
  }
  func.func @transform_5(%arg0: i32) -> (i32, i32) {
    %c0_i32 = arith.constant 0 : i32
    %c0_i32_0 = arith.constant 0 : i32
    return %c0_i32, %arg0 : i32, i32
  }
}

</mosaic_0001>

<llo_original>
// kernel: double_direct_forward.1
$region0: #{double_direct_forward.1}
  #allocation0 [shape = 'u32[]', space=smem, size = 0x4, offset = 0x4, fixed_abs, tag = 'smem constant byte address 0x4 - core index']
  #allocation1 [shape = 'u32[144,128]{1,0:T(1,128)}', space=vmem, size = 0x12000, scoped, tag = 'internal scratch']
  %s0 = inlined_call_operand.vmem [shape: bf16[2,1024], index: 0, kind: input, shape index: {}]
  %s1 = inlined_call_operand.hbm [shape: s8[2,2304,256], index: 1, kind: input, shape index: {}]
  %s2 = inlined_call_operand.hbm [shape: s8[256,512], index: 2, kind: input, shape index: {}]
  %s3 = inlined_call_operand.hbm [shape: f32[2,8,512], index: 3, kind: input, shape index: {}]
  %s4 = inlined_call_operand.vmem [shape: bf16[2,256,8], index: 4, kind: input, shape index: {}]
  %s5 = inlined_call_operand.vmem [shape: f32[2,256], index: 5, kind: output, shape index: {}]
  %s6 = sld [smem:[#allocation0]]
  $region65: #{double_direct_forward.1} parent=0
    _
  %s8 = ssub.s32 1, %s6
  %s9 = scalar_select 0, %s8, %s6
  $region1: #{double_direct_forward.1} parent=0
    #allocation2 [shape = 'u8[1179648]{0}', space=vmem, size = 0x120000, scoped, tag = 'input window, operand 1']
    #allocation3 [shape = 's32[2]{0}', space=sflag, size = 0x8, scoped, tag = 'scoped memory for double_direct_forward.1']
    #allocation4 [shape = 'u8[131072]{0}', space=vmem, size = 0x20000, scoped, tag = 'input window, operand 2, single buffered']
    #allocation5 [shape = 's32[1]{0}', space=sflag, size = 0x4, scoped, tag = 'scoped memory for double_direct_forward.1']
    #allocation6 [shape = 'u8[32768]{0}', space=vmem, size = 0x8000, scoped, tag = 'input window, operand 3']
    %10 = vsyncpa [#allocation3], 0
    %s11 = scalar_lea.sflag [#allocation3], 1
    %12 = vsyncpa %s11, 0
    %13 = vsyncpa [#allocation5], 0
    loop: start=0, step=1, limit=4
    $region2: #{double_direct_forward.1} parent=1 // loop_pre_header
      _
    $region3: #{double_direct_forward.1} parent=1 // loop_header
      %s15 = sphi 0, %s19
      %p16 = scmp.ge.s32.totalorder %s15, 4
      %s23 = sphi 0, %s23
      %s25 = sphi 0, %s23
      %s26 = sphi 0, %s25
      %s40 = sphi 0, %s26
      %s46 = sphi 0, %s48
      %s49 = sphi 0, %s46
      %s50 = sphi 0, %s49
      %s66 = sphi 0, %s50
      %s70 = sphi 0, %s70
      %s72 = sphi 0, %s70
      %s73 = sphi 0, %s72
      %s87 = sphi 0, %s73
      %s93 = sphi 0, %s95
      %s96 = sphi 0, %s93
      %s97 = sphi 0, %s96
      %s113 = sphi 0, %s97
      %s119 = sphi 0, %s121
      %s122 = sphi 0, %s119
      %s123 = sphi 0, %s122
      %s139 = sphi 0, %s123
      %s145 = sphi 0, %s147
      %s148 = sphi 0, %s145
      %s149 = sphi 0, %s148
      %s165 = sphi 0, %s149
    $region4: #{double_direct_forward.1} parent=1 // loop_header_branch
      %18 = sbr.rel (%p16) target = $region8
    $region5: #{double_direct_forward.1} parent=1 // loop_body
      %s20 = ssub.s32 %s15, 1
      %s21 = ssub.s32 %s15, 2
      %s22 = sadd.s32 %s15, 1
      %s24 = sadd.s32 %s23, 1
      %p27 = scmp.eq.s32.totalorder %s15, 1
      %p28 = scmp.ne.s32.totalorder %s23, %s25
      %p29 = scmp.eq.s32.totalorder %s15, 0
      %p30 = por %p28, %p29
      %p31 = scmp.ne.s32.totalorder %s23, %s25
      %p32 = scmp.eq.s32.totalorder %s20, 1
      %p33 = por %p31, %p32
      %p34 = scmp.ne.s32.totalorder %s25, %s26
      %p35 = scmp.eq.s32.totalorder %s20, 0
      %p36 = por %p34, %p35
      %p37 = scmp.ne.s32.totalorder %s25, %s26
      %p38 = scmp.eq.s32.totalorder %s21, 1
      %p39 = por %p37, %p38
      %p41 = scmp.ne.s32.totalorder %s26, %s40
      %p42 = scmp.eq.s32.totalorder %s21, 0
      %p43 = por %p41, %p42
      %s44 = ssub.s32 %s15, %s22
      %p45 = scmp.eq.s32.totalorder %s44, 0
      %s47 = sadd.s32 %s46, 1
      %s48 = scalar_select %p45, %s46, %s47
      %p51 = pneg %p45
      %p52 = scmp.eq.s32.totalorder %s15, 1
      %p53 = por %p51, %p52
      %p54 = scmp.ne.s32.totalorder %s46, %s49
      %p55 = scmp.eq.s32.totalorder %s15, 0
      %p56 = por %p54, %p55
      %p57 = scmp.ne.s32.totalorder %s46, %s49
      %p58 = scmp.eq.s32.totalorder %s20, 1
      %p59 = por %p57, %p58
      %p60 = scmp.ne.s32.totalorder %s49, %s50
      %p61 = scmp.eq.s32.totalorder %s20, 0
      %p62 = por %p60, %p61
      %p63 = scmp.ne.s32.totalorder %s49, %s50
      %p64 = scmp.eq.s32.totalorder %s21, 1
      %p65 = por %p63, %p64
      %p67 = scmp.ne.s32.totalorder %s50, %s66
      %p68 = scmp.eq.s32.totalorder %s21, 0
      %p69 = por %p67, %p68
      %s71 = sadd.s32 %s70, 1
      %p74 = scmp.eq.s32.totalorder %s15, 1
      %p75 = scmp.ne.s32.totalorder %s70, %s72
      %p76 = scmp.eq.s32.totalorder %s15, 0
      %p77 = por %p75, %p76
      %p78 = scmp.ne.s32.totalorder %s70, %s72
      %p79 = scmp.eq.s32.totalorder %s20, 1
      %p80 = por %p78, %p79
      %p81 = scmp.ne.s32.totalorder %s72, %s73
      %p82 = scmp.eq.s32.totalorder %s20, 0
      %p83 = por %p81, %p82
      %p84 = scmp.ne.s32.totalorder %s72, %s73
      %p85 = scmp.eq.s32.totalorder %s21, 1
      %p86 = por %p84, %p85
      %p88 = scmp.ne.s32.totalorder %s73, %s87
      %p89 = scmp.eq.s32.totalorder %s21, 0
      %p90 = por %p88, %p89
      %s91 = ssub.s32 %s15, %s22
      %p92 = scmp.eq.s32.totalorder %s91, 0
      %s94 = sadd.s32 %s93, 1
      %s95 = scalar_select %p92, %s93, %s94
      %p98 = pneg %p92
      %p99 = scmp.eq.s32.totalorder %s15, 1
      %p100 = por %p98, %p99
      %p101 = scmp.ne.s32.totalorder %s93, %s96
      %p102 = scmp.eq.s32.totalorder %s15, 0
      %p103 = por %p101, %p102
      %p104 = scmp.ne.s32.totalorder %s93, %s96
      %p105 = scmp.eq.s32.totalorder %s20, 1
      %p106 = por %p104, %p105
      %p107 = scmp.ne.s32.totalorder %s96, %s97
      %p108 = scmp.eq.s32.totalorder %s20, 0
      %p109 = por %p107, %p108
      %p110 = scmp.ne.s32.totalorder %s96, %s97
      %p111 = scmp.eq.s32.totalorder %s21, 1
      %p112 = por %p110, %p111
      %p114 = scmp.ne.s32.totalorder %s97, %s113
      %p115 = scmp.eq.s32.totalorder %s21, 0
      %p116 = por %p114, %p115
      %s117 = ssub.s32 %s15, %s22
      %p118 = scmp.eq.s32.totalorder %s117, 0
      %s120 = sadd.s32 %s119, 1
      %s121 = scalar_select %p118, %s119, %s120
      %p124 = pneg %p118
      %p125 = scmp.eq.s32.totalorder %s15, 1
      %p126 = por %p124, %p125
      %p127 = scmp.ne.s32.totalorder %s119, %s122
      %p128 = scmp.eq.s32.totalorder %s15, 0
      %p129 = por %p127, %p128
      %p130 = scmp.ne.s32.totalorder %s119, %s122
      %p131 = scmp.eq.s32.totalorder %s20, 1
      %p132 = por %p130, %p131
      %p133 = scmp.ne.s32.totalorder %s122, %s123
      %p134 = scmp.eq.s32.totalorder %s20, 0
      %p135 = por %p133, %p134
      %p136 = scmp.ne.s32.totalorder %s122, %s123
      %p137 = scmp.eq.s32.totalorder %s21, 1
      %p138 = por %p136, %p137
      %p140 = scmp.ne.s32.totalorder %s123, %s139
      %p141 = scmp.eq.s32.totalorder %s21, 0
      %p142 = por %p140, %p141
      %s143 = ssub.s32 %s15, %s22
      %p144 = scmp.eq.s32.totalorder %s143, 0
      %s146 = sadd.s32 %s145, 1
      %s147 = scalar_select %p144, %s145, %s146
      %p150 = pneg %p144
      %p151 = scmp.eq.s32.totalorder %s15, 1
      %p152 = por %p150, %p151
      %p153 = scmp.ne.s32.totalorder %s145, %s148
      %p154 = scmp.eq.s32.totalorder %s15, 0
      %p155 = por %p153, %p154
      %p156 = scmp.ne.s32.totalorder %s145, %s148
      %p157 = scmp.eq.s32.totalorder %s20, 1
      %p158 = por %p156, %p157
      %p159 = scmp.ne.s32.totalorder %s148, %s149
      %p160 = scmp.eq.s32.totalorder %s20, 0
      %p161 = por %p159, %p160
      %p162 = scmp.ne.s32.totalorder %s148, %s149
      %p163 = scmp.eq.s32.totalorder %s21, 1
      %p164 = por %p162, %p163
      %p166 = scmp.ne.s32.totalorder %s149, %s165
      %p167 = scmp.eq.s32.totalorder %s21, 0
      %p168 = por %p166, %p167
      %p169 = scmp.le.s32.totalorder 1, %s15
      %p170 = scmp.lt.s32.totalorder %s15, 3
      %p171 = pnand %p169, %p170
      %p172 = pneg %p171
      // Predicated region
      $region9: #{double_direct_forward.1} parent=5 // pred_check
        _
      $region10: #{double_direct_forward.1} parent=5 // pred_check_branch
        %174 = sbr.rel (%p171) target = $region12
      $region11: #{double_direct_forward.1} parent=5 // pred_region
        %s175 = ssub.s32 %s15, 1
        // Predicated region
        $region13: #{double_direct_forward.1} parent=11 // pred_check
          %p176 = pneg %p36
        $region14: #{double_direct_forward.1} parent=11 // pred_check_branch
          %178 = sbr.rel (%p176) target = $region16
        $region15: #{double_direct_forward.1} parent=11 // pred_region
          _
        $region16: #{double_direct_forward.1} parent=11 // pred_fallthru
          _
        // Predicated region
        $region17: #{double_direct_forward.1} parent=11 // pred_check
          %p179 = pneg %p83
        $region18: #{double_direct_forward.1} parent=11 // pred_check_branch
          %181 = sbr.rel (%p179) target = $region20
        $region19: #{double_direct_forward.1} parent=11 // pred_region
          %s183 = ssub.s32 4096, 4096
          %184 = vsyncadd [#allocation5], %s183
          %s185 = sshll.u32 [#allocation4], 4
          %s186 = int_to_ptr.vmem [resolvable:$true] %s185
          %191 = dma.hbm_to_vmem [thread:$0]  %s2, 4096, %s186, [#allocation5], 512, 512, 32
        $region20: #{double_direct_forward.1} parent=11 // pred_fallthru
          _
      $region12: #{double_direct_forward.1} parent=5 // pred_fallthru
        _
      %p192 = scmp.lt.s32.totalorder %s15, 2
      // Predicated region
      $region21: #{double_direct_forward.1} parent=5 // pred_check
        %p193 = pneg %p192
      $region22: #{double_direct_forward.1} parent=5 // pred_check_branch
        %195 = sbr.rel (%p193) target = $region24
      $region23: #{double_direct_forward.1} parent=5 // pred_region
        // Predicated region
        $region25: #{double_direct_forward.1} parent=23 // pred_check
          %p196 = pneg %p56
        $region26: #{double_direct_forward.1} parent=23 // pred_check_branch
          %198 = sbr.rel (%p196) target = $region28
        $region27: #{double_direct_forward.1} parent=23 // pred_region
          %s199 = sand.u32 %s15, 1
          %s200 = scalar_lea.sflag [#allocation3], %s199
          %s201 = sand.u32 %s46, 1
          %s202 = smul.addr %s201, 1152
          %s203 = scalar_lea.vmem [#allocation2], %s202
          %s205 = ssub.s32 18432, 18432
          %206 = vsyncadd %s200, %s205
          %s207 = smul.addr %s15, 144
          %s208 = smul.addr %s207, 128
          %s209 = scalar_lea.hbm %s1, %s208
          %s210 = sshll.u32 %s203, 4
          %s211 = int_to_ptr.vmem [resolvable:$true] %s210
          %216 = dma.hbm_to_vmem [thread:$0]  %s209, 18432, %s211, %s200, 256, 256, 16
        $region28: #{double_direct_forward.1} parent=23 // pred_fallthru
          _
        // Predicated region
        $region29: #{double_direct_forward.1} parent=23 // pred_check
          %p217 = pneg %p103
        $region30: #{double_direct_forward.1} parent=23 // pred_check_branch
          %219 = sbr.rel (%p217) target = $region32
        $region31: #{double_direct_forward.1} parent=23 // pred_region
          %s220 = sand.u32 %s15, 1
          %s221 = scalar_lea.sflag [#allocation3], %s220
          %s222 = sand.u32 %s93, 1
          %s223 = smul.addr %s222, 32
          %s224 = scalar_lea.vmem [#allocation6], %s223
          %s226 = ssub.s32 512, 512
          %227 = vsyncadd %s221, %s226
          %s228 = smul.addr %s15, 4
          %s229 = smul.addr %s228, 128
          %s230 = scalar_lea.hbm %s3, %s229
          %s232 = sshll.u32 %s224, 4
          %s233 = int_to_ptr.vmem [resolvable:$true] %s232
          %235 = dma.hbm_to_vmem [thread:$0]  %s230, 512, %s233, %s221
        $region32: #{double_direct_forward.1} parent=23 // pred_fallthru
          _
        // Predicated region
        $region33: #{double_direct_forward.1} parent=23 // pred_check
          %p236 = pneg %p129
        $region34: #{double_direct_forward.1} parent=23 // pred_check_branch
          %238 = sbr.rel (%p236) target = $region36
        $region35: #{double_direct_forward.1} parent=23 // pred_region
          %p239 = scmp.lt.s32.totalorder %s15, 1
          %s240 = scalar_select %p239, %s15, 1
          %s241 = smul.addr %s240, 32
          %s242 = smul.addr %s241, 4
          %s243 = scalar_lea.vmem %s4, %s242
        $region36: #{double_direct_forward.1} parent=23 // pred_fallthru
          _
      $region24: #{double_direct_forward.1} parent=5 // pred_fallthru
        _
      %p244 = scmp.le.s32.totalorder 1, %s15
      %p245 = scmp.lt.s32.totalorder %s15, 3
      %p246 = pnand %p244, %p245
      %p247 = pneg %p246
      // Predicated region
      $region37: #{double_direct_forward.1} parent=5 // pred_check
        _
      $region38: #{double_direct_forward.1} parent=5 // pred_check_branch
        %249 = sbr.rel (%p246) target = $region40
      $region39: #{double_direct_forward.1} parent=5 // pred_region
        %s250 = ssub.s32 %s15, 1
        %s251 = sand.u32 %s20, 1
        %s252 = scalar_lea.sflag [#allocation3], %s251
        %s253 = sand.u32 %s49, 1
        %s254 = smul.addr %s253, 1152
        %s255 = scalar_lea.vmem [#allocation2], %s254
        // Predicated region
        $region41: #{double_direct_forward.1} parent=39 // pred_check
          %p256 = pneg %p62
        $region42: #{double_direct_forward.1} parent=39 // pred_check_branch
          %258 = sbr.rel (%p256) target = $region44
        $region43: #{double_direct_forward.1} parent=39 // pred_region
          %259 = dma.done %s252, 18432
        $region44: #{double_direct_forward.1} parent=39 // pred_fallthru
          _
        // Predicated region
        $region45: #{double_direct_forward.1} parent=39 // pred_check
          %p260 = pneg %p83
        $region46: #{double_direct_forward.1} parent=39 // pred_check_branch
          %262 = sbr.rel (%p260) target = $region48
        $region47: #{double_direct_forward.1} parent=39 // pred_region
          %263 = dma.done [#allocation5], 4096
        $region48: #{double_direct_forward.1} parent=39 // pred_fallthru
          _
        %s264 = sand.u32 %s20, 1
        %s265 = scalar_lea.sflag [#allocation3], %s264
        %s266 = sand.u32 %s96, 1
        %s267 = smul.addr %s266, 32
        %s268 = scalar_lea.vmem [#allocation6], %s267
        // Predicated region
        $region49: #{double_direct_forward.1} parent=39 // pred_check
          %p269 = pneg %p109
        $region50: #{double_direct_forward.1} parent=39 // pred_check_branch
          %271 = sbr.rel (%p269) target = $region52
        $region51: #{double_direct_forward.1} parent=39 // pred_region
          %272 = dma.done %s265, 512
        $region52: #{double_direct_forward.1} parent=39 // pred_fallthru
          _
        %p273 = pneg %p36
        %p274 = pneg %p33
        %s275 = sand.u32 %s20, 1
        %s276 = scalar_lea.sflag [#allocation3], %s275
        %s277 = sand.u32 %s49, 1
        %s278 = smul.addr %s277, 1152
        %s279 = scalar_lea.vmem [#allocation2], %s278
        %p280 = pneg %p62
        %p281 = pneg %p59
        %p282 = pneg %p83
        %p283 = pneg %p80
        %s284 = sand.u32 %s20, 1
        %s285 = scalar_lea.sflag [#allocation3], %s284
        %s286 = sand.u32 %s96, 1
        %s287 = smul.addr %s286, 32
        %s288 = scalar_lea.vmem [#allocation6], %s287
        %p289 = pneg %p109
        %p290 = pneg %p106
        %p291 = scmp.lt.s32.totalorder %s20, 1
        %s292 = scalar_select %p291, %s20, 1
        %s293 = smul.addr %s292, 32
        %s294 = smul.addr %s293, 4
        %s295 = scalar_lea.vmem %s4, %s294
        %p296 = pneg %p135
        %p297 = pneg %p132
        %p298 = pneg %p161
        %p299 = pneg %p158
        %p300 = scmp.lt.s32.totalorder %s20, 1
        %s301 = scalar_select %p300, %s20, 1
        %s302 = smul.addr %s301, 2
        %s303 = scalar_lea.vmem %s5, %s302
        %p304 = scmp.lt.s32.totalorder %s20, 1
        %s305 = scalar_select %p304, %s20, 1
        %s306 = smul.addr %s305, 32
        %s307 = smul.addr %s306, 4
        %s308 = scalar_lea.vmem %s4, %s307
        %p309 = scmp.lt.s32.totalorder %s20, 1
        %s310 = scalar_select %p309, %s20, 1
        %s311 = smul.addr %s310, 2
        %s312 = scalar_lea.vmem %s5, %s311
        %v314 = vld [vmem:[%s0] sm:$0xff]
        %v315 = vld [vmem:[%s268] sm:$0xff]
        %v316 = vld [vmem:[%s268 + $0x8] sm:$0xff]
        %v317 = vld [vmem:[%s268 + $0x10] sm:$0xff]
        %v318 = vld [vmem:[%s268 + $0x18] sm:$0xff]
        %v319 = vld [vmem:[%s255] sm:$0xff]
        %v320 = vld [vmem:[%s255 + $0x8] sm:$0xff]
        %v321 = vld [vmem:[%s255 + $0x10] sm:$0xff]
        %v322 = vld [vmem:[%s255 + $0x18] sm:$0xff]
        %v323 = vld [vmem:[%s255 + $0x20] sm:$0xff]
        %v324 = vld [vmem:[%s255 + $0x28] sm:$0xff]
        %v325 = vld [vmem:[%s255 + $0x30] sm:$0xff]
        %v326 = vld [vmem:[%s255 + $0x38] sm:$0xff]
        %v327 = vld [vmem:[%s255 + $0x40] sm:$0xff]
        %v328 = vld [vmem:[%s255 + $0x48] sm:$0xff]
        %v329 = vld [vmem:[%s255 + $0x50] sm:$0xff]
        %v330 = vld [vmem:[%s255 + $0x58] sm:$0xff]
        %v331 = vld [vmem:[%s255 + $0x60] sm:$0xff]
        %v332 = vld [vmem:[%s255 + $0x68] sm:$0xff]
        %v333 = vld [vmem:[%s255 + $0x70] sm:$0xff]
        %v334 = vld [vmem:[%s255 + $0x78] sm:$0xff]
        %v335 = vld [vmem:[%s255 + $0x80] sm:$0xff]
        %v336 = vld [vmem:[%s255 + $0x88] sm:$0xff]
        %v337 = vld [vmem:[%s255 + $0x90] sm:$0xff]
        %v338 = vld [vmem:[%s255 + $0x98] sm:$0xff]
        %v339 = vld [vmem:[%s255 + $0xa0] sm:$0xff]
        %v340 = vld [vmem:[%s255 + $0xa8] sm:$0xff]
        %v341 = vld [vmem:[%s255 + $0xb0] sm:$0xff]
        %v342 = vld [vmem:[%s255 + $0xb8] sm:$0xff]
        %v343 = vld [vmem:[%s255 + $0xc0] sm:$0xff]
        %v344 = vld [vmem:[%s255 + $0xc8] sm:$0xff]
        %v345 = vld [vmem:[%s255 + $0xd0] sm:$0xff]
        %v346 = vld [vmem:[%s255 + $0xd8] sm:$0xff]
        %v347 = vld [vmem:[%s255 + $0xe0] sm:$0xff]
        %v348 = vld [vmem:[%s255 + $0xe8] sm:$0xff]
        %v349 = vld [vmem:[%s255 + $0xf0] sm:$0xff]
        %v350 = vld [vmem:[%s255 + $0xf8] sm:$0xff]
        %v351 = vld [vmem:[%s255 + $0x100] sm:$0xff]
        %v352 = vld [vmem:[%s255 + $0x108] sm:$0xff]
        %v353 = vld [vmem:[%s255 + $0x110] sm:$0xff]
        %v354 = vld [vmem:[%s255 + $0x118] sm:$0xff]
        %v355 = vld [vmem:[%s255 + $0x120] sm:$0xff]
        %v356 = vld [vmem:[%s255 + $0x128] sm:$0xff]
        %v357 = vld [vmem:[%s255 + $0x130] sm:$0xff]
        %v358 = vld [vmem:[%s255 + $0x138] sm:$0xff]
        %v359 = vld [vmem:[%s255 + $0x140] sm:$0xff]
        %v360 = vld [vmem:[%s255 + $0x148] sm:$0xff]
        %v361 = vld [vmem:[%s255 + $0x150] sm:$0xff]
        %v362 = vld [vmem:[%s255 + $0x158] sm:$0xff]
        %v363 = vld [vmem:[%s255 + $0x160] sm:$0xff]
        %v364 = vld [vmem:[%s255 + $0x168] sm:$0xff]
        %v365 = vld [vmem:[%s255 + $0x170] sm:$0xff]
        %v366 = vld [vmem:[%s255 + $0x178] sm:$0xff]
        %v367 = vunpack.c.l.s8.bf16 %v319
        %v368 = vunpack.c.l.s8.bf16 %v320
        %v369 = vunpack.c.h.s8.bf16 %v319
        %v370 = vunpack.c.h.s8.bf16 %v320
        %v371 = vunpack.c.l.s8.bf16 %v321
        %v372 = vunpack.c.l.s8.bf16 %v322
        %v373 = vunpack.c.h.s8.bf16 %v321
        %v374 = vunpack.c.h.s8.bf16 %v322
        %v375 = vunpack.c.l.s8.bf16 %v323
        %v376 = vunpack.c.l.s8.bf16 %v324
        %v377 = vunpack.c.h.s8.bf16 %v323
        %v378 = vunpack.c.h.s8.bf16 %v324
        %v379 = vunpack.c.l.s8.bf16 %v325
        %v380 = vunpack.c.l.s8.bf16 %v326
        %v381 = vunpack.c.h.s8.bf16 %v325
        %v382 = vunpack.c.h.s8.bf16 %v326
        %v383 = vunpack.c.l.s8.bf16 %v327
        %v384 = vunpack.c.l.s8.bf16 %v328
        %v385 = vunpack.c.h.s8.bf16 %v327
        %v386 = vunpack.c.h.s8.bf16 %v328
        %v387 = vunpack.c.l.s8.bf16 %v329
        %v388 = vunpack.c.l.s8.bf16 %v330
        %v389 = vunpack.c.h.s8.bf16 %v329
        %v390 = vunpack.c.h.s8.bf16 %v330
        %v391 = vunpack.c.l.s8.bf16 %v331
        %v392 = vunpack.c.l.s8.bf16 %v332
        %v393 = vunpack.c.h.s8.bf16 %v331
        %v394 = vunpack.c.h.s8.bf16 %v332
        %v395 = vunpack.c.l.s8.bf16 %v333
        %v396 = vunpack.c.l.s8.bf16 %v334
        %v397 = vunpack.c.h.s8.bf16 %v333
        %v398 = vunpack.c.h.s8.bf16 %v334
        %v399 = vunpack.c.l.s8.bf16 %v335
        %v400 = vunpack.c.l.s8.bf16 %v336
        %v401 = vunpack.c.h.s8.bf16 %v335
        %v402 = vunpack.c.h.s8.bf16 %v336
        %v403 = vunpack.c.l.s8.bf16 %v337
        %v404 = vunpack.c.l.s8.bf16 %v338
        %v405 = vunpack.c.h.s8.bf16 %v337
        %v406 = vunpack.c.h.s8.bf16 %v338
        %v407 = vunpack.c.l.s8.bf16 %v339
        %v408 = vunpack.c.l.s8.bf16 %v340
        %v409 = vunpack.c.h.s8.bf16 %v339
        %v410 = vunpack.c.h.s8.bf16 %v340
        %v411 = vunpack.c.l.s8.bf16 %v341
        %v412 = vunpack.c.l.s8.bf16 %v342
        %v413 = vunpack.c.h.s8.bf16 %v341
        %v414 = vunpack.c.h.s8.bf16 %v342
        %v415 = vunpack.c.l.s8.bf16 %v343
        %v416 = vunpack.c.l.s8.bf16 %v344
        %v417 = vunpack.c.h.s8.bf16 %v343
        %v418 = vunpack.c.h.s8.bf16 %v344
        %v419 = vunpack.c.l.s8.bf16 %v345
        %v420 = vunpack.c.l.s8.bf16 %v346
        %v421 = vunpack.c.h.s8.bf16 %v345
        %v422 = vunpack.c.h.s8.bf16 %v346
        %v423 = vunpack.c.l.s8.bf16 %v347
        %v424 = vunpack.c.l.s8.bf16 %v348
        %v425 = vunpack.c.h.s8.bf16 %v347
        %v426 = vunpack.c.h.s8.bf16 %v348
        %v427 = vunpack.c.l.s8.bf16 %v349
        %v428 = vunpack.c.l.s8.bf16 %v350
        %v429 = vunpack.c.h.s8.bf16 %v349
        %v430 = vunpack.c.h.s8.bf16 %v350
        %v431 = vunpack.c.l.s8.bf16 %v351
        %v432 = vunpack.c.l.s8.bf16 %v352
        %v433 = vunpack.c.h.s8.bf16 %v351
        %v434 = vunpack.c.h.s8.bf16 %v352
        %v435 = vunpack.c.l.s8.bf16 %v353
        %v436 = vunpack.c.l.s8.bf16 %v354
        %v437 = vunpack.c.h.s8.bf16 %v353
        %v438 = vunpack.c.h.s8.bf16 %v354
        %v439 = vunpack.c.l.s8.bf16 %v355
        %v440 = vunpack.c.l.s8.bf16 %v356
        %v441 = vunpack.c.h.s8.bf16 %v355
        %v442 = vunpack.c.h.s8.bf16 %v356
        %v443 = vunpack.c.l.s8.bf16 %v357
        %v444 = vunpack.c.l.s8.bf16 %v358
        %v445 = vunpack.c.h.s8.bf16 %v357
        %v446 = vunpack.c.h.s8.bf16 %v358
        %v447 = vunpack.c.l.s8.bf16 %v359
        %v448 = vunpack.c.l.s8.bf16 %v360
        %v449 = vunpack.c.h.s8.bf16 %v359
        %v450 = vunpack.c.h.s8.bf16 %v360
        %v451 = vunpack.c.l.s8.bf16 %v361
        %v452 = vunpack.c.l.s8.bf16 %v362
        %v453 = vunpack.c.h.s8.bf16 %v361
        %v454 = vunpack.c.h.s8.bf16 %v362
        %v455 = vunpack.c.l.s8.bf16 %v363
        %v456 = vunpack.c.l.s8.bf16 %v364
        %v457 = vunpack.c.h.s8.bf16 %v363
        %v458 = vunpack.c.h.s8.bf16 %v364
        %v459 = vunpack.c.l.s8.bf16 %v365
        %v460 = vunpack.c.l.s8.bf16 %v366
        %v461 = vunpack.c.h.s8.bf16 %v365
        %v462 = vunpack.c.h.s8.bf16 %v366
        %v464 = vcombine.high %v314, %v314
        %v466 = vunpack.c.l.s4 1966171168
        %v467 = vunpack.c.0.s8 %v466
        %v468 = vlaneseq
        %v469 = vshrl.u32 %v468, 7
        %v470 = vsub.s32 %v467, %v469
        %v471 = vrot.slane %v314, %v470
        %v473 = vunpack.c.l.s4 1966171168
        %v474 = vunpack.c.0.s8 %v473
        %v475 = vlaneseq
        %v476 = vshrl.u32 %v475, 7
        %v477 = vsub.s32 %v474, %v476
        %v478 = vrot.slane %v464, %v477
        %v479 = vcombine.high %v471, %v471
        %v480 = vcombine.high %v478, %v478
        %v482 = vunpack.c.l.s4 1966171168
        %v483 = vunpack.c.0.s8 %v482
        %v484 = vlaneseq
        %v485 = vshrl.u32 %v484, 7
        %v486 = vsub.s32 %v483, %v485
        %v487 = vrot.slane %v471, %v486
        %v489 = vunpack.c.l.s4 1966171168
        %v490 = vunpack.c.0.s8 %v489
        %v491 = vlaneseq
        %v492 = vshrl.u32 %v491, 7
        %v493 = vsub.s32 %v490, %v492
        %v494 = vrot.slane %v478, %v493
        %v496 = vunpack.c.l.s4 1966171168
        %v497 = vunpack.c.0.s8 %v496
        %v498 = vlaneseq
        %v499 = vshrl.u32 %v498, 7
        %v500 = vsub.s32 %v497, %v499
        %v501 = vrot.slane %v479, %v500
        %v503 = vunpack.c.l.s4 1966171168
        %v504 = vunpack.c.0.s8 %v503
        %v505 = vlaneseq
        %v506 = vshrl.u32 %v505, 7
        %v507 = vsub.s32 %v504, %v506
        %v508 = vrot.slane %v480, %v507
        %v509 = vcombine.high %v487, %v487
        %v510 = vcombine.high %v501, %v501
        %517 = vmatprep.subr.bf16.mxu0 %v368
        %518 = vmatpush1.bf16.msra.mxu0 %v367
        %519 = vmatprep.subr.bf16.mxu0 %v370
        %520 = vmatpush1.bf16.msra.mxu0 %v369
        %521 = vmatprep.subr.bf16.mxu0 %v372
        %522 = vmatpush1.bf16.msra.mxu0 %v371
        %523 = vmatprep.subr.bf16.mxu0 %v374
        %524 = vmatpush1.bf16.msra.mxu0 %v373
        %525 = vmatprep.subr.bf16.mxu0 %v376
        %526 = vmatpush1.bf16.msra.mxu0 %v375
        %527 = vmatprep.subr.bf16.mxu0 %v378
        %528 = vmatpush1.bf16.msra.mxu0 %v377
        %529 = vmatprep.subr.bf16.mxu0 %v380
        %530 = vmatpush1.bf16.msra.mxu0 %v379
        %531 = vmatprep.subr.bf16.mxu0 %v382
        %532 = vmatpush1.bf16.msra.mxu0 %v381
        %533 = vmatprep.subr.bf16.mxu0 %v384
        %534 = vmatpush1.bf16.msra.mxu0 %v383
        %535 = vmatprep.subr.bf16.mxu0 %v386
        %536 = vmatpush1.bf16.msra.mxu0 %v385
        %537 = vmatprep.subr.bf16.mxu0 %v388
        %538 = vmatpush1.bf16.msra.mxu0 %v387
        %539 = vmatprep.subr.bf16.mxu0 %v390
        %540 = vmatpush1.bf16.msra.mxu0 %v389
        %541 = vmatprep.subr.bf16.mxu0 %v392
        %542 = vmatpush1.bf16.msra.mxu0 %v391
        %543 = vmatprep.subr.bf16.mxu0 %v394
        %544 = vmatpush1.bf16.msra.mxu0 %v393
        %545 = vmatprep.subr.bf16.mxu0 %v396
        %546 = vmatpush1.bf16.msra.mxu0 %v395
        %547 = vmatprep.subr.bf16.mxu0 %v398
        %548 = vmatpush1.bf16.msra.mxu0 %v397
        %549 = vmatprep.mubr.bf16.mxu0 %v501
        %550 = vmatmul.mubr.bf16.gmra.mrb[0].mxu0 %v487
        %v551 = vpop.f32.mrb[0].mxu0
        %v552 = vadd.f32 0.0, %v551
        %v553 = vpop.f32.mrb[0].mxu0
        %v554 = vadd.f32 0.0, %v553
        %v555 = vpop.f32.mrb[0].mxu0
        %v556 = vpop.f32.mrb[0].mxu0
        %557 = vdwg.mxu0
        %558 = vmatprep.subr.bf16.mxu0 %v400
        %559 = vmatpush1.bf16.msra.mxu0 %v399
        %560 = vmatprep.subr.bf16.mxu0 %v402
        %561 = vmatpush1.bf16.msra.mxu0 %v401
        %562 = vmatprep.subr.bf16.mxu0 %v404
        %563 = vmatpush1.bf16.msra.mxu0 %v403
        %564 = vmatprep.subr.bf16.mxu0 %v406
        %565 = vmatpush1.bf16.msra.mxu0 %v405
        %566 = vmatprep.subr.bf16.mxu0 %v408
        %567 = vmatpush1.bf16.msra.mxu0 %v407
        %568 = vmatprep.subr.bf16.mxu0 %v410
        %569 = vmatpush1.bf16.msra.mxu0 %v409
        %570 = vmatprep.subr.bf16.mxu0 %v412
        %571 = vmatpush1.bf16.msra.mxu0 %v411
        %572 = vmatprep.subr.bf16.mxu0 %v414
        %573 = vmatpush1.bf16.msra.mxu0 %v413
        %574 = vmatprep.subr.bf16.mxu0 %v416
        %575 = vmatpush1.bf16.msra.mxu0 %v415
        %576 = vmatprep.subr.bf16.mxu0 %v418
        %577 = vmatpush1.bf16.msra.mxu0 %v417
        %578 = vmatprep.subr.bf16.mxu0 %v420
        %579 = vmatpush1.bf16.msra.mxu0 %v419
        %580 = vmatprep.subr.bf16.mxu0 %v422
        %581 = vmatpush1.bf16.msra.mxu0 %v421
        %582 = vmatprep.subr.bf16.mxu0 %v424
        %583 = vmatpush1.bf16.msra.mxu0 %v423
        %584 = vmatprep.subr.bf16.mxu0 %v426
        %585 = vmatpush1.bf16.msra.mxu0 %v425
        %586 = vmatprep.subr.bf16.mxu0 %v428
        %587 = vmatpush1.bf16.msra.mxu0 %v427
        %588 = vmatprep.subr.bf16.mxu0 %v430
        %589 = vmatpush1.bf16.msra.mxu0 %v429
        %590 = vmatprep.mubr.bf16.mxu0 %v510
        %591 = vmatmul.mubr.bf16.gmra.mrb[0].mxu0 %v509
        %v592 = vpop.f32.mrb[0].mxu0
        %v593 = vadd.f32 %v552, %v592
        %v594 = vpop.f32.mrb[0].mxu0
        %v595 = vadd.f32 %v554, %v594
        %v596 = vpop.f32.mrb[0].mxu0
        %v597 = vpop.f32.mrb[0].mxu0
        %598 = vdwg.mxu0
        %599 = vmatprep.subr.bf16.mxu0 %v432
        %600 = vmatpush1.bf16.msra.mxu0 %v431
        %601 = vmatprep.subr.bf16.mxu0 %v434
        %602 = vmatpush1.bf16.msra.mxu0 %v433
        %603 = vmatprep.subr.bf16.mxu0 %v436
        %604 = vmatpush1.bf16.msra.mxu0 %v435
        %605 = vmatprep.subr.bf16.mxu0 %v438
        %606 = vmatpush1.bf16.msra.mxu0 %v437
        %607 = vmatprep.subr.bf16.mxu0 %v440
        %608 = vmatpush1.bf16.msra.mxu0 %v439
        %609 = vmatprep.subr.bf16.mxu0 %v442
        %610 = vmatpush1.bf16.msra.mxu0 %v441
        %611 = vmatprep.subr.bf16.mxu0 %v444
        %612 = vmatpush1.bf16.msra.mxu0 %v443
        %613 = vmatprep.subr.bf16.mxu0 %v446
        %614 = vmatpush1.bf16.msra.mxu0 %v445
        %615 = vmatprep.subr.bf16.mxu0 %v448
        %616 = vmatpush1.bf16.msra.mxu0 %v447
        %617 = vmatprep.subr.bf16.mxu0 %v450
        %618 = vmatpush1.bf16.msra.mxu0 %v449
        %619 = vmatprep.subr.bf16.mxu0 %v452
        %620 = vmatpush1.bf16.msra.mxu0 %v451
        %621 = vmatprep.subr.bf16.mxu0 %v454
        %622 = vmatpush1.bf16.msra.mxu0 %v453
        %623 = vmatprep.subr.bf16.mxu0 %v456
        %624 = vmatpush1.bf16.msra.mxu0 %v455
        %625 = vmatprep.subr.bf16.mxu0 %v458
        %626 = vmatpush1.bf16.msra.mxu0 %v457
        %627 = vmatprep.subr.bf16.mxu0 %v460
        %628 = vmatpush1.bf16.msra.mxu0 %v459
        %629 = vmatprep.subr.bf16.mxu0 %v462
        %630 = vmatpush1.bf16.msra.mxu0 %v461
        %631 = vmatprep.mubr.bf16.mxu0 %v508
        %632 = vmatmul.mubr.bf16.gmra.mrb[0].mxu0 %v494
        %v633 = vpop.f32.mrb[0].mxu0
        %v634 = vadd.f32 %v593, %v633
        %v635 = vpop.f32.mrb[0].mxu0
        %v636 = vadd.f32 %v595, %v635
        %v637 = vpop.f32.mrb[0].mxu0
        %v638 = vpop.f32.mrb[0].mxu0
        %639 = vdwg.mxu0
        %v640 = vld [vmem:[%s255 + $0x180] sm:$0xff]
        %v641 = vld [vmem:[%s255 + $0x188] sm:$0xff]
        %v642 = vld [vmem:[%s255 + $0x190] sm:$0xff]
        %v643 = vld [vmem:[%s255 + $0x198] sm:$0xff]
        %v644 = vld [vmem:[%s255 + $0x1a0] sm:$0xff]
        %v645 = vld [vmem:[%s255 + $0x1a8] sm:$0xff]
        %v646 = vld [vmem:[%s255 + $0x1b0] sm:$0xff]
        %v647 = vld [vmem:[%s255 + $0x1b8] sm:$0xff]
        %v648 = vld [vmem:[%s255 + $0x1c0] sm:$0xff]
        %v649 = vld [vmem:[%s255 + $0x1c8] sm:$0xff]
        %v650 = vld [vmem:[%s255 + $0x1d0] sm:$0xff]
        %v651 = vld [vmem:[%s255 + $0x1d8] sm:$0xff]
        %v652 = vld [vmem:[%s255 + $0x1e0] sm:$0xff]
        %v653 = vld [vmem:[%s255 + $0x1e8] sm:$0xff]
        %v654 = vld [vmem:[%s255 + $0x1f0] sm:$0xff]
        %v655 = vld [vmem:[%s255 + $0x1f8] sm:$0xff]
        %v656 = vld [vmem:[%s255 + $0x200] sm:$0xff]
        %v657 = vld [vmem:[%s255 + $0x208] sm:$0xff]
        %v658 = vld [vmem:[%s255 + $0x210] sm:$0xff]
        %v659 = vld [vmem:[%s255 + $0x218] sm:$0xff]
        %v660 = vld [vmem:[%s255 + $0x220] sm:$0xff]
        %v661 = vld [vmem:[%s255 + $0x228] sm:$0xff]
        %v662 = vld [vmem:[%s255 + $0x230] sm:$0xff]
        %v663 = vld [vmem:[%s255 + $0x238] sm:$0xff]
        %v664 = vld [vmem:[%s255 + $0x240] sm:$0xff]
        %v665 = vld [vmem:[%s255 + $0x248] sm:$0xff]
        %v666 = vld [vmem:[%s255 + $0x250] sm:$0xff]
        %v667 = vld [vmem:[%s255 + $0x258] sm:$0xff]
        %v668 = vld [vmem:[%s255 + $0x260] sm:$0xff]
        %v669 = vld [vmem:[%s255 + $0x268] sm:$0xff]
        %v670 = vld [vmem:[%s255 + $0x270] sm:$0xff]
        %v671 = vld [vmem:[%s255 + $0x278] sm:$0xff]
        %v672 = vld [vmem:[%s255 + $0x280] sm:$0xff]
        %v673 = vld [vmem:[%s255 + $0x288] sm:$0xff]
        %v674 = vld [vmem:[%s255 + $0x290] sm:$0xff]
        %v675 = vld [vmem:[%s255 + $0x298] sm:$0xff]
        %v676 = vld [vmem:[%s255 + $0x2a0] sm:$0xff]
        %v677 = vld [vmem:[%s255 + $0x2a8] sm:$0xff]
        %v678 = vld [vmem:[%s255 + $0x2b0] sm:$0xff]
        %v679 = vld [vmem:[%s255 + $0x2b8] sm:$0xff]
        %v680 = vld [vmem:[%s255 + $0x2c0] sm:$0xff]
        %v681 = vld [vmem:[%s255 + $0x2c8] sm:$0xff]
        %v682 = vld [vmem:[%s255 + $0x2d0] sm:$0xff]
        %v683 = vld [vmem:[%s255 + $0x2d8] sm:$0xff]
        %v684 = vld [vmem:[%s255 + $0x2e0] sm:$0xff]
        %v685 = vld [vmem:[%s255 + $0x2e8] sm:$0xff]
        %v686 = vld [vmem:[%s255 + $0x2f0] sm:$0xff]
        %v687 = vld [vmem:[%s255 + $0x2f8] sm:$0xff]
        %v688 = vunpack.c.l.s8.bf16 %v640
        %v689 = vunpack.c.l.s8.bf16 %v641
        %v690 = vunpack.c.h.s8.bf16 %v640
        %v691 = vunpack.c.h.s8.bf16 %v641
        %v692 = vunpack.c.l.s8.bf16 %v642
        %v693 = vunpack.c.l.s8.bf16 %v643
        %v694 = vunpack.c.h.s8.bf16 %v642
        %v695 = vunpack.c.h.s8.bf16 %v643
        %v696 = vunpack.c.l.s8.bf16 %v644
        %v697 = vunpack.c.l.s8.bf16 %v645
        %v698 = vunpack.c.h.s8.bf16 %v644
        %v699 = vunpack.c.h.s8.bf16 %v645
        %v700 = vunpack.c.l.s8.bf16 %v646
        %v701 = vunpack.c.l.s8.bf16 %v647
        %v702 = vunpack.c.h.s8.bf16 %v646
        %v703 = vunpack.c.h.s8.bf16 %v647
        %v704 = vunpack.c.l.s8.bf16 %v648
        %v705 = vunpack.c.l.s8.bf16 %v649
        %v706 = vunpack.c.h.s8.bf16 %v648
        %v707 = vunpack.c.h.s8.bf16 %v649
        %v708 = vunpack.c.l.s8.bf16 %v650
        %v709 = vunpack.c.l.s8.bf16 %v651
        %v710 = vunpack.c.h.s8.bf16 %v650
        %v711 = vunpack.c.h.s8.bf16 %v651
        %v712 = vunpack.c.l.s8.bf16 %v652
        %v713 = vunpack.c.l.s8.bf16 %v653
        %v714 = vunpack.c.h.s8.bf16 %v652
        %v715 = vunpack.c.h.s8.bf16 %v653
        %v716 = vunpack.c.l.s8.bf16 %v654
        %v717 = vunpack.c.l.s8.bf16 %v655
        %v718 = vunpack.c.h.s8.bf16 %v654
        %v719 = vunpack.c.h.s8.bf16 %v655
        %v720 = vunpack.c.l.s8.bf16 %v656
        %v721 = vunpack.c.l.s8.bf16 %v657
        %v722 = vunpack.c.h.s8.bf16 %v656
        %v723 = vunpack.c.h.s8.bf16 %v657
        %v724 = vunpack.c.l.s8.bf16 %v658
        %v725 = vunpack.c.l.s8.bf16 %v659
        %v726 = vunpack.c.h.s8.bf16 %v658
        %v727 = vunpack.c.h.s8.bf16 %v659
        %v728 = vunpack.c.l.s8.bf16 %v660
        %v729 = vunpack.c.l.s8.bf16 %v661
        %v730 = vunpack.c.h.s8.bf16 %v660
        %v731 = vunpack.c.h.s8.bf16 %v661
        %v732 = vunpack.c.l.s8.bf16 %v662
        %v733 = vunpack.c.l.s8.bf16 %v663
        %v734 = vunpack.c.h.s8.bf16 %v662
        %v735 = vunpack.c.h.s8.bf16 %v663
        %v736 = vunpack.c.l.s8.bf16 %v664
        %v737 = vunpack.c.l.s8.bf16 %v665
        %v738 = vunpack.c.h.s8.bf16 %v664
        %v739 = vunpack.c.h.s8.bf16 %v665
        %v740 = vunpack.c.l.s8.bf16 %v666
        %v741 = vunpack.c.l.s8.bf16 %v667
        %v742 = vunpack.c.h.s8.bf16 %v666
        %v743 = vunpack.c.h.s8.bf16 %v667
        %v744 = vunpack.c.l.s8.bf16 %v668
        %v745 = vunpack.c.l.s8.bf16 %v669
        %v746 = vunpack.c.h.s8.bf16 %v668
        %v747 = vunpack.c.h.s8.bf16 %v669
        %v748 = vunpack.c.l.s8.bf16 %v670
        %v749 = vunpack.c.l.s8.bf16 %v671
        %v750 = vunpack.c.h.s8.bf16 %v670
        %v751 = vunpack.c.h.s8.bf16 %v671
        %v752 = vunpack.c.l.s8.bf16 %v672
        %v753 = vunpack.c.l.s8.bf16 %v673
        %v754 = vunpack.c.h.s8.bf16 %v672
        %v755 = vunpack.c.h.s8.bf16 %v673
        %v756 = vunpack.c.l.s8.bf16 %v674
        %v757 = vunpack.c.l.s8.bf16 %v675
        %v758 = vunpack.c.h.s8.bf16 %v674
        %v759 = vunpack.c.h.s8.bf16 %v675
        %v760 = vunpack.c.l.s8.bf16 %v676
        %v761 = vunpack.c.l.s8.bf16 %v677
        %v762 = vunpack.c.h.s8.bf16 %v676
        %v763 = vunpack.c.h.s8.bf16 %v677
        %v764 = vunpack.c.l.s8.bf16 %v678
        %v765 = vunpack.c.l.s8.bf16 %v679
        %v766 = vunpack.c.h.s8.bf16 %v678
        %v767 = vunpack.c.h.s8.bf16 %v679
        %v768 = vunpack.c.l.s8.bf16 %v680
        %v769 = vunpack.c.l.s8.bf16 %v681
        %v770 = vunpack.c.h.s8.bf16 %v680
        %v771 = vunpack.c.h.s8.bf16 %v681
        %v772 = vunpack.c.l.s8.bf16 %v682
        %v773 = vunpack.c.l.s8.bf16 %v683
        %v774 = vunpack.c.h.s8.bf16 %v682
        %v775 = vunpack.c.h.s8.bf16 %v683
        %v776 = vunpack.c.l.s8.bf16 %v684
        %v777 = vunpack.c.l.s8.bf16 %v685
        %v778 = vunpack.c.h.s8.bf16 %v684
        %v779 = vunpack.c.h.s8.bf16 %v685
        %v780 = vunpack.c.l.s8.bf16 %v686
        %v781 = vunpack.c.l.s8.bf16 %v687
        %v782 = vunpack.c.h.s8.bf16 %v686
        %v783 = vunpack.c.h.s8.bf16 %v687
        %784 = vmatprep.subr.bf16.mxu0 %v689
        %785 = vmatpush1.bf16.msra.mxu0 %v688
        %786 = vmatprep.subr.bf16.mxu0 %v691
        %787 = vmatpush1.bf16.msra.mxu0 %v690
        %788 = vmatprep.subr.bf16.mxu0 %v693
        %789 = vmatpush1.bf16.msra.mxu0 %v692
        %790 = vmatprep.subr.bf16.mxu0 %v695
        %791 = vmatpush1.bf16.msra.mxu0 %v694
        %792 = vmatprep.subr.bf16.mxu0 %v697
        %793 = vmatpush1.bf16.msra.mxu0 %v696
        %794 = vmatprep.subr.bf16.mxu0 %v699
        %795 = vmatpush1.bf16.msra.mxu0 %v698
        %796 = vmatprep.subr.bf16.mxu0 %v701
        %797 = vmatpush1.bf16.msra.mxu0 %v700
        %798 = vmatprep.subr.bf16.mxu0 %v703
        %799 = vmatpush1.bf16.msra.mxu0 %v702
        %800 = vmatprep.subr.bf16.mxu0 %v705
        %801 = vmatpush1.bf16.msra.mxu0 %v704
        %802 = vmatprep.subr.bf16.mxu0 %v707
        %803 = vmatpush1.bf16.msra.mxu0 %v706
        %804 = vmatprep.subr.bf16.mxu0 %v709
        %805 = vmatpush1.bf16.msra.mxu0 %v708
        %806 = vmatprep.subr.bf16.mxu0 %v711
        %807 = vmatpush1.bf16.msra.mxu0 %v710
        %808 = vmatprep.subr.bf16.mxu0 %v713
        %809 = vmatpush1.bf16.msra.mxu0 %v712
        %810 = vmatprep.subr.bf16.mxu0 %v715
        %811 = vmatpush1.bf16.msra.mxu0 %v714
        %812 = vmatprep.subr.bf16.mxu0 %v717
        %813 = vmatpush1.bf16.msra.mxu0 %v716
        %814 = vmatprep.subr.bf16.mxu0 %v719
        %815 = vmatpush1.bf16.msra.mxu0 %v718
        %816 = vmatprep.mubr.bf16.mxu0 %v501
        %817 = vmatmul.mubr.bf16.gmra.mrb[0].mxu0 %v487
        %v818 = vpop.f32.mrb[0].mxu0
        %v819 = vadd.f32 0.0, %v818
        %v820 = vpop.f32.mrb[0].mxu0
        %v821 = vadd.f32 0.0, %v820
        %v822 = vpop.f32.mrb[0].mxu0
        %v823 = vpop.f32.mrb[0].mxu0
        %824 = vdwg.mxu0
        %825 = vmatprep.subr.bf16.mxu0 %v721
        %826 = vmatpush1.bf16.msra.mxu0 %v720
        %827 = vmatprep.subr.bf16.mxu0 %v723
        %828 = vmatpush1.bf16.msra.mxu0 %v722
        %829 = vmatprep.subr.bf16.mxu0 %v725
        %830 = vmatpush1.bf16.msra.mxu0 %v724
        %831 = vmatprep.subr.bf16.mxu0 %v727
        %832 = vmatpush1.bf16.msra.mxu0 %v726
        %833 = vmatprep.subr.bf16.mxu0 %v729
        %834 = vmatpush1.bf16.msra.mxu0 %v728
        %835 = vmatprep.subr.bf16.mxu0 %v731
        %836 = vmatpush1.bf16.msra.mxu0 %v730
        %837 = vmatprep.subr.bf16.mxu0 %v733
        %838 = vmatpush1.bf16.msra.mxu0 %v732
        %839 = vmatprep.subr.bf16.mxu0 %v735
        %840 = vmatpush1.bf16.msra.mxu0 %v734
        %841 = vmatprep.subr.bf16.mxu0 %v737
        %842 = vmatpush1.bf16.msra.mxu0 %v736
        %843 = vmatprep.subr.bf16.mxu0 %v739
        %844 = vmatpush1.bf16.msra.mxu0 %v738
        %845 = vmatprep.subr.bf16.mxu0 %v741
        %846 = vmatpush1.bf16.msra.mxu0 %v740
        %847 = vmatprep.subr.bf16.mxu0 %v743
        %848 = vmatpush1.bf16.msra.mxu0 %v742
        %849 = vmatprep.subr.bf16.mxu0 %v745
        %850 = vmatpush1.bf16.msra.mxu0 %v744
        %851 = vmatprep.subr.bf16.mxu0 %v747
        %852 = vmatpush1.bf16.msra.mxu0 %v746
        %853 = vmatprep.subr.bf16.mxu0 %v749
        %854 = vmatpush1.bf16.msra.mxu0 %v748
        %855 = vmatprep.subr.bf16.mxu0 %v751
        %856 = vmatpush1.bf16.msra.mxu0 %v750
        %857 = vmatprep.mubr.bf16.mxu0 %v510
        %858 = vmatmul.mubr.bf16.gmra.mrb[0].mxu0 %v509
        %v859 = vpop.f32.mrb[0].mxu0
        %v860 = vadd.f32 %v819, %v859
        %v861 = vpop.f32.mrb[0].mxu0
        %v862 = vadd.f32 %v821, %v861
        %v863 = vpop.f32.mrb[0].mxu0
        %v864 = vpop.f32.mrb[0].mxu0
        %865 = vdwg.mxu0
        %866 = vmatprep.subr.bf16.mxu0 %v753
        %867 = vmatpush1.bf16.msra.mxu0 %v752
        %868 = vmatprep.subr.bf16.mxu0 %v755
        %869 = vmatpush1.bf16.msra.mxu0 %v754
        %870 = vmatprep.subr.bf16.mxu0 %v757
        %871 = vmatpush1.bf16.msra.mxu0 %v756
        %872 = vmatprep.subr.bf16.mxu0 %v759
        %873 = vmatpush1.bf16.msra.mxu0 %v758
        %874 = vmatprep.subr.bf16.mxu0 %v761
        %875 = vmatpush1.bf16.msra.mxu0 %v760
        %876 = vmatprep.subr.bf16.mxu0 %v763
        %877 = vmatpush1.bf16.msra.mxu0 %v762
        %878 = vmatprep.subr.bf16.mxu0 %v765
        %879 = vmatpush1.bf16.msra.mxu0 %v764
        %880 = vmatprep.subr.bf16.mxu0 %v767
        %881 = vmatpush1.bf16.msra.mxu0 %v766
        %882 = vmatprep.subr.bf16.mxu0 %v769
        %883 = vmatpush1.bf16.msra.mxu0 %v768
        %884 = vmatprep.subr.bf16.mxu0 %v771
        %885 = vmatpush1.bf16.msra.mxu0 %v770
        %886 = vmatprep.subr.bf16.mxu0 %v773
        %887 = vmatpush1.bf16.msra.mxu0 %v772
        %888 = vmatprep.subr.bf16.mxu0 %v775
        %889 = vmatpush1.bf16.msra.mxu0 %v774
        %890 = vmatprep.subr.bf16.mxu0 %v777
        %891 = vmatpush1.bf16.msra.mxu0 %v776
        %892 = vmatprep.subr.bf16.mxu0 %v779
        %893 = vmatpush1.bf16.msra.mxu0 %v778
        %894 = vmatprep.subr.bf16.mxu0 %v781
        %895 = vmatpush1.bf16.msra.mxu0 %v780
        %896 = vmatprep.subr.bf16.mxu0 %v783
        %897 = vmatpush1.bf16.msra.mxu0 %v782
        %898 = vmatprep.mubr.bf16.mxu0 %v508
        %899 = vmatmul.mubr.bf16.gmra.mrb[0].mxu0 %v494
        %v900 = vpop.f32.mrb[0].mxu0
        %v901 = vadd.f32 %v860, %v900
        %v902 = vpop.f32.mrb[0].mxu0
        %v903 = vadd.f32 %v862, %v902
        %v904 = vpop.f32.mrb[0].mxu0
        %v905 = vpop.f32.mrb[0].mxu0
        %906 = vdwg.mxu0
        %v907 = vlaneseq
        %v908 = vshrl.u32 %v907, 7
        %v909 = vsub.s32 0, %v908
        %v910 = vrot.slane %v315, %v909
        %v911 = vlaneseq
        %v912 = vshrl.u32 %v911, 7
        %v913 = vsub.s32 0, %v912
        %v914 = vrot.slane %v316, %v913
        %v915 = vlaneseq
        %v916 = vshrl.u32 %v915, 7
        %v917 = vsub.s32 0, %v916
        %v918 = vrot.slane %v317, %v917
        %v919 = vlaneseq
        %v920 = vshrl.u32 %v919, 7
        %v921 = vsub.s32 0, %v920
        %v922 = vrot.slane %v318, %v921
        %v923 = vmul.f32 %v634, %v910
        %v924 = vmul.f32 %v636, %v914
        %v925 = vmul.f32 %v901, %v918
        %v926 = vmul.f32 %v903, %v922
        %v927 = vlaneseq
        %v928 = vshrl.u32 %v927, 7
        %v929 = vsub.s32 1, %v928
        %v930 = vrot.slane %v315, %v929
        %v931 = vlaneseq
        %v932 = vshrl.u32 %v931, 7
        %v933 = vsub.s32 1, %v932
        %v934 = vrot.slane %v316, %v933
        %v935 = vlaneseq
        %v936 = vshrl.u32 %v935, 7
        %v937 = vsub.s32 1, %v936
        %v938 = vrot.slane %v317, %v937
        %v939 = vlaneseq
        %v940 = vshrl.u32 %v939, 7
        %v941 = vsub.s32 1, %v940
        %v942 = vrot.slane %v318, %v941
        %v943 = vadd.f32 %v923, %v930
        %v944 = vadd.f32 %v924, %v934
        %v945 = vadd.f32 %v925, %v938
        %v946 = vadd.f32 %v926, %v942
        %v947 = vld [vmem:[#allocation4] sm:$0xff]
        %v948 = vld [vmem:[#allocation4 + $0x8] sm:$0xff]
        %v949 = vld [vmem:[#allocation4 + $0x10] sm:$0xff]
        %v950 = vld [vmem:[#allocation4 + $0x18] sm:$0xff]
        %v951 = vld [vmem:[#allocation4 + $0x20] sm:$0xff]
        %v952 = vld [vmem:[#allocation4 + $0x28] sm:$0xff]
        %v953 = vld [vmem:[#allocation4 + $0x30] sm:$0xff]
        %v954 = vld [vmem:[#allocation4 + $0x38] sm:$0xff]
        %v955 = vld [vmem:[#allocation4 + $0x40] sm:$0xff]
        %v956 = vld [vmem:[#allocation4 + $0x48] sm:$0xff]
        %v957 = vld [vmem:[#allocation4 + $0x50] sm:$0xff]
        %v958 = vld [vmem:[#allocation4 + $0x58] sm:$0xff]
        %v959 = vld [vmem:[#allocation4 + $0x60] sm:$0xff]
        %v960 = vld [vmem:[#allocation4 + $0x68] sm:$0xff]
        %v961 = vld [vmem:[#allocation4 + $0x70] sm:$0xff]
        %v962 = vld [vmem:[#allocation4 + $0x78] sm:$0xff]
        %v963 = vld [vmem:[#allocation4 + $0x80] sm:$0xff]
        %v964 = vld [vmem:[#allocation4 + $0x88] sm:$0xff]
        %v965 = vld [vmem:[#allocation4 + $0x90] sm:$0xff]
        %v966 = vld [vmem:[#allocation4 + $0x98] sm:$0xff]
        %v967 = vld [vmem:[#allocation4 + $0xa0] sm:$0xff]
        %v968 = vld [vmem:[#allocation4 + $0xa8] sm:$0xff]
        %v969 = vld [vmem:[#allocation4 + $0xb0] sm:$0xff]
        %v970 = vld [vmem:[#allocation4 + $0xb8] sm:$0xff]
        %v971 = vld [vmem:[#allocation4 + $0xc0] sm:$0xff]
        %v972 = vld [vmem:[#allocation4 + $0xc8] sm:$0xff]
        %v973 = vld [vmem:[#allocation4 + $0xd0] sm:$0xff]
        %v974 = vld [vmem:[#allocation4 + $0xd8] sm:$0xff]
        %v975 = vld [vmem:[#allocation4 + $0xe0] sm:$0xff]
        %v976 = vld [vmem:[#allocation4 + $0xe8] sm:$0xff]
        %v977 = vld [vmem:[#allocation4 + $0xf0] sm:$0xff]
        %v978 = vld [vmem:[#allocation4 + $0xf8] sm:$0xff]
        %v979 = vunpack.c.l.s8.bf16 %v947
        %v980 = vunpack.c.l.s8.bf16 %v948
        %v981 = vunpack.c.l.s8.bf16 %v949
        %v982 = vunpack.c.l.s8.bf16 %v950
        %v983 = vunpack.c.h.s8.bf16 %v947
        %v984 = vunpack.c.h.s8.bf16 %v948
        %v985 = vunpack.c.h.s8.bf16 %v949
        %v986 = vunpack.c.h.s8.bf16 %v950
        %v987 = vunpack.c.l.s8.bf16 %v951
        %v988 = vunpack.c.l.s8.bf16 %v952
        %v989 = vunpack.c.l.s8.bf16 %v953
        %v990 = vunpack.c.l.s8.bf16 %v954
        %v991 = vunpack.c.h.s8.bf16 %v951
        %v992 = vunpack.c.h.s8.bf16 %v952
        %v993 = vunpack.c.h.s8.bf16 %v953
        %v994 = vunpack.c.h.s8.bf16 %v954
        %v995 = vunpack.c.l.s8.bf16 %v955
        %v996 = vunpack.c.l.s8.bf16 %v956
        %v997 = vunpack.c.l.s8.bf16 %v957
        %v998 = vunpack.c.l.s8.bf16 %v958
        %v999 = vunpack.c.h.s8.bf16 %v955
        %v1000 = vunpack.c.h.s8.bf16 %v956
        %v1001 = vunpack.c.h.s8.bf16 %v957
        %v1002 = vunpack.c.h.s8.bf16 %v958
        %v1003 = vunpack.c.l.s8.bf16 %v959
        %v1004 = vunpack.c.l.s8.bf16 %v960
        %v1005 = vunpack.c.l.s8.bf16 %v961
        %v1006 = vunpack.c.l.s8.bf16 %v962
        %v1007 = vunpack.c.h.s8.bf16 %v959
        %v1008 = vunpack.c.h.s8.bf16 %v960
        %v1009 = vunpack.c.h.s8.bf16 %v961
        %v1010 = vunpack.c.h.s8.bf16 %v962
        %v1011 = vunpack.c.l.s8.bf16 %v963
        %v1012 = vunpack.c.l.s8.bf16 %v964
        %v1013 = vunpack.c.l.s8.bf16 %v965
        %v1014 = vunpack.c.l.s8.bf16 %v966
        %v1015 = vunpack.c.h.s8.bf16 %v963
        %v1016 = vunpack.c.h.s8.bf16 %v964
        %v1017 = vunpack.c.h.s8.bf16 %v965
        %v1018 = vunpack.c.h.s8.bf16 %v966
        %v1019 = vunpack.c.l.s8.bf16 %v967
        %v1020 = vunpack.c.l.s8.bf16 %v968
        %v1021 = vunpack.c.l.s8.bf16 %v969
        %v1022 = vunpack.c.l.s8.bf16 %v970
        %v1023 = vunpack.c.h.s8.bf16 %v967
        %v1024 = vunpack.c.h.s8.bf16 %v968
        %v1025 = vunpack.c.h.s8.bf16 %v969
        %v1026 = vunpack.c.h.s8.bf16 %v970
        %v1027 = vunpack.c.l.s8.bf16 %v971
        %v1028 = vunpack.c.l.s8.bf16 %v972
        %v1029 = vunpack.c.l.s8.bf16 %v973
        %v1030 = vunpack.c.l.s8.bf16 %v974
        %v1031 = vunpack.c.h.s8.bf16 %v971
        %v1032 = vunpack.c.h.s8.bf16 %v972
        %v1033 = vunpack.c.h.s8.bf16 %v973
        %v1034 = vunpack.c.h.s8.bf16 %v974
        %v1035 = vunpack.c.l.s8.bf16 %v975
        %v1036 = vunpack.c.l.s8.bf16 %v976
        %v1037 = vunpack.c.l.s8.bf16 %v977
        %v1038 = vunpack.c.l.s8.bf16 %v978
        %v1039 = vunpack.c.h.s8.bf16 %v975
        %v1040 = vunpack.c.h.s8.bf16 %v976
        %v1041 = vunpack.c.h.s8.bf16 %v977
        %v1042 = vunpack.c.h.s8.bf16 %v978
        %v1043 = vcombine.high %v494, %v494
        %v1044 = vcombine.high %v508, %v508
        %1047 = vmatprep.subr.bf16.mxu0 %v980
        %1048 = vmatpush1.bf16.msra.mxu0 %v979
        %1049 = vmatprep.subr.bf16.mxu0 %v984
        %1050 = vmatpush1.bf16.msra.mxu0 %v983
        %1051 = vmatprep.subr.bf16.mxu0 %v988
        %1052 = vmatpush1.bf16.msra.mxu0 %v987
        %1053 = vmatprep.subr.bf16.mxu0 %v992
        %1054 = vmatpush1.bf16.msra.mxu0 %v991
        %1055 = vmatprep.subr.bf16.mxu0 %v996
        %1056 = vmatpush1.bf16.msra.mxu0 %v995
        %1057 = vmatprep.subr.bf16.mxu0 %v1000
        %1058 = vmatpush1.bf16.msra.mxu0 %v999
        %1059 = vmatprep.subr.bf16.mxu0 %v1004
        %1060 = vmatpush1.bf16.msra.mxu0 %v1003
        %1061 = vmatprep.subr.bf16.mxu0 %v1008
        %1062 = vmatpush1.bf16.msra.mxu0 %v1007
        %1063 = vmatprep.subr.bf16.mxu0 %v1012
        %1064 = vmatpush1.bf16.msra.mxu0 %v1011
        %1065 = vmatprep.subr.bf16.mxu0 %v1016
        %1066 = vmatpush1.bf16.msra.mxu0 %v1015
        %1067 = vmatprep.subr.bf16.mxu0 %v1020
        %1068 = vmatpush1.bf16.msra.mxu0 %v1019
        %1069 = vmatprep.subr.bf16.mxu0 %v1024
        %1070 = vmatpush1.bf16.msra.mxu0 %v1023
        %1071 = vmatprep.subr.bf16.mxu0 %v1028
        %1072 = vmatpush1.bf16.msra.mxu0 %v1027
        %1073 = vmatprep.subr.bf16.mxu0 %v1032
        %1074 = vmatpush1.bf16.msra.mxu0 %v1031
        %1075 = vmatprep.subr.bf16.mxu0 %v1036
        %1076 = vmatpush1.bf16.msra.mxu0 %v1035
        %1077 = vmatprep.subr.bf16.mxu0 %v1040
        %1078 = vmatpush1.bf16.msra.mxu0 %v1039
        %1079 = vmatprep.mubr.bf16.mxu0 %v1044
        %1080 = vmatmul.mubr.bf16.gmra.mrb[0].mxu0 %v1043
        %v1081 = vpop.f32.mrb[0].mxu0
        %v1082 = vadd.f32 0.0, %v1081
        %v1083 = vpop.f32.mrb[0].mxu0
        %v1084 = vadd.f32 0.0, %v1083
        %v1085 = vpop.f32.mrb[0].mxu0
        %v1086 = vpop.f32.mrb[0].mxu0
        %1087 = vdwg.mxu0
        %1088 = vmatprep.subr.bf16.mxu0 %v982
        %1089 = vmatpush1.bf16.msra.mxu0 %v981
        %1090 = vmatprep.subr.bf16.mxu0 %v986
        %1091 = vmatpush1.bf16.msra.mxu0 %v985
        %1092 = vmatprep.subr.bf16.mxu0 %v990
        %1093 = vmatpush1.bf16.msra.mxu0 %v989
        %1094 = vmatprep.subr.bf16.mxu0 %v994
        %1095 = vmatpush1.bf16.msra.mxu0 %v993
        %1096 = vmatprep.subr.bf16.mxu0 %v998
        %1097 = vmatpush1.bf16.msra.mxu0 %v997
        %1098 = vmatprep.subr.bf16.mxu0 %v1002
        %1099 = vmatpush1.bf16.msra.mxu0 %v1001
        %1100 = vmatprep.subr.bf16.mxu0 %v1006
        %1101 = vmatpush1.bf16.msra.mxu0 %v1005
        %1102 = vmatprep.subr.bf16.mxu0 %v1010
        %1103 = vmatpush1.bf16.msra.mxu0 %v1009
        %1104 = vmatprep.subr.bf16.mxu0 %v1014
        %1105 = vmatpush1.bf16.msra.mxu0 %v1013
        %1106 = vmatprep.subr.bf16.mxu0 %v1018
        %1107 = vmatpush1.bf16.msra.mxu0 %v1017
        %1108 = vmatprep.subr.bf16.mxu0 %v1022
        %1109 = vmatpush1.bf16.msra.mxu0 %v1021
        %1110 = vmatprep.subr.bf16.mxu0 %v1026
        %1111 = vmatpush1.bf16.msra.mxu0 %v1025
        %1112 = vmatprep.subr.bf16.mxu0 %v1030
        %1113 = vmatpush1.bf16.msra.mxu0 %v1029
        %1114 = vmatprep.subr.bf16.mxu0 %v1034
        %1115 = vmatpush1.bf16.msra.mxu0 %v1033
        %1116 = vmatprep.subr.bf16.mxu0 %v1038
        %1117 = vmatpush1.bf16.msra.mxu0 %v1037
        %1118 = vmatprep.subr.bf16.mxu0 %v1042
        %1119 = vmatpush1.bf16.msra.mxu0 %v1041
        %1120 = vmatprep.mubr.bf16.mxu0 %v1044
        %1121 = vmatmul.mubr.bf16.gmra.mrb[0].mxu0 %v1043
        %v1122 = vpop.f32.mrb[0].mxu0
        %v1123 = vadd.f32 0.0, %v1122
        %v1124 = vpop.f32.mrb[0].mxu0
        %v1125 = vadd.f32 0.0, %v1124
        %v1126 = vpop.f32.mrb[0].mxu0
        %v1127 = vpop.f32.mrb[0].mxu0
        %1128 = vdwg.mxu0
        %v1129 = vlaneseq
        %v1130 = vshrl.u32 %v1129, 7
        %v1131 = vsub.s32 5, %v1130
        %v1132 = vrot.slane %v315, %v1131
        %v1133 = vlaneseq
        %v1134 = vshrl.u32 %v1133, 7
        %v1135 = vsub.s32 5, %v1134
        %v1136 = vrot.slane %v316, %v1135
        %v1137 = vlaneseq
        %v1138 = vshrl.u32 %v1137, 7
        %v1139 = vsub.s32 5, %v1138
        %v1140 = vrot.slane %v317, %v1139
        %v1141 = vlaneseq
        %v1142 = vshrl.u32 %v1141, 7
        %v1143 = vsub.s32 5, %v1142
        %v1144 = vrot.slane %v318, %v1143
        %v1145 = vmul.f32 %v1082, %v1132
        %v1146 = vmul.f32 %v1084, %v1136
        %v1147 = vmul.f32 %v1123, %v1140
        %v1148 = vmul.f32 %v1125, %v1144
        %v1149 = vadd.f32 %v943, %v1145
        %v1150 = vadd.f32 %v944, %v1146
        %v1151 = vadd.f32 %v945, %v1147
        %v1152 = vadd.f32 %v946, %v1148
        %v1153 = vpack.c.bf16 %v1149, %v1149
        %v1154 = vpack.c.bf16 %v1150, %v1150
        %v1155 = vpack.c.bf16 %v1151, %v1151
        %v1156 = vpack.c.bf16 %v1152, %v1152
        %v1157 = vld [vmem:[%s255 + $0x300] sm:$0xff]
        %v1158 = vld [vmem:[%s255 + $0x308] sm:$0xff]
        %v1159 = vld [vmem:[%s255 + $0x310] sm:$0xff]
        %v1160 = vld [vmem:[%s255 + $0x318] sm:$0xff]
        %v1161 = vld [vmem:[%s255 + $0x320] sm:$0xff]
        %v1162 = vld [vmem:[%s255 + $0x328] sm:$0xff]
        %v1163 = vld [vmem:[%s255 + $0x330] sm:$0xff]
        %v1164 = vld [vmem:[%s255 + $0x338] sm:$0xff]
        %v1165 = vld [vmem:[%s255 + $0x340] sm:$0xff]
        %v1166 = vld [vmem:[%s255 + $0x348] sm:$0xff]
        %v1167 = vld [vmem:[%s255 + $0x350] sm:$0xff]
        %v1168 = vld [vmem:[%s255 + $0x358] sm:$0xff]
        %v1169 = vld [vmem:[%s255 + $0x360] sm:$0xff]
        %v1170 = vld [vmem:[%s255 + $0x368] sm:$0xff]
        %v1171 = vld [vmem:[%s255 + $0x370] sm:$0xff]
        %v1172 = vld [vmem:[%s255 + $0x378] sm:$0xff]
        %v1173 = vld [vmem:[%s255 + $0x380] sm:$0xff]
        %v1174 = vld [vmem:[%s255 + $0x388] sm:$0xff]
        %v1175 = vld [vmem:[%s255 + $0x390] sm:$0xff]
        %v1176 = vld [vmem:[%s255 + $0x398] sm:$0xff]
        %v1177 = vld [vmem:[%s255 + $0x3a0] sm:$0xff]
        %v1178 = vld [vmem:[%s255 + $0x3a8] sm:$0xff]
        %v1179 = vld [vmem:[%s255 + $0x3b0] sm:$0xff]
        %v1180 = vld [vmem:[%s255 + $0x3b8] sm:$0xff]
        %v1181 = vld [vmem:[%s255 + $0x3c0] sm:$0xff]
        %v1182 = vld [vmem:[%s255 + $0x3c8] sm:$0xff]
        %v1183 = vld [vmem:[%s255 + $0x3d0] sm:$0xff]
        %v1184 = vld [vmem:[%s255 + $0x3d8] sm:$0xff]
        %v1185 = vld [vmem:[%s255 + $0x3e0] sm:$0xff]
        %v1186 = vld [vmem:[%s255 + $0x3e8] sm:$0xff]
        %v1187 = vld [vmem:[%s255 + $0x3f0] sm:$0xff]
        %v1188 = vld [vmem:[%s255 + $0x3f8] sm:$0xff]
        %v1189 = vunpack.c.l.s8.bf16 %v1157
        %v1190 = vunpack.c.l.s8.bf16 %v1158
        %v1191 = vunpack.c.h.s8.bf16 %v1157
        %v1192 = vunpack.c.h.s8.bf16 %v1158
        %v1193 = vunpack.c.l.s8.bf16 %v1159
        %v1194 = vunpack.c.l.s8.bf16 %v1160
        %v1195 = vunpack.c.h.s8.bf16 %v1159
        %v1196 = vunpack.c.h.s8.bf16 %v1160
        %v1197 = vunpack.c.l.s8.bf16 %v1161
        %v1198 = vunpack.c.l.s8.bf16 %v1162
        %v1199 = vunpack.c.h.s8.bf16 %v1161
        %v1200 = vunpack.c.h.s8.bf16 %v1162
        %v1201 = vunpack.c.l.s8.bf16 %v1163
        %v1202 = vunpack.c.l.s8.bf16 %v1164
        %v1203 = vunpack.c.h.s8.bf16 %v1163
        %v1204 = vunpack.c.h.s8.bf16 %v1164
        %v1205 = vunpack.c.l.s8.bf16 %v1165
        %v1206 = vunpack.c.l.s8.bf16 %v1166
        %v1207 = vunpack.c.h.s8.bf16 %v1165
        %v1208 = vunpack.c.h.s8.bf16 %v1166
        %v1209 = vunpack.c.l.s8.bf16 %v1167
        %v1210 = vunpack.c.l.s8.bf16 %v1168
        %v1211 = vunpack.c.h.s8.bf16 %v1167
        %v1212 = vunpack.c.h.s8.bf16 %v1168
        %v1213 = vunpack.c.l.s8.bf16 %v1169
        %v1214 = vunpack.c.l.s8.bf16 %v1170
        %v1215 = vunpack.c.h.s8.bf16 %v1169
        %v1216 = vunpack.c.h.s8.bf16 %v1170
        %v1217 = vunpack.c.l.s8.bf16 %v1171
        %v1218 = vunpack.c.l.s8.bf16 %v1172
        %v1219 = vunpack.c.h.s8.bf16 %v1171
        %v1220 = vunpack.c.h.s8.bf16 %v1172
        %v1221 = vunpack.c.l.s8.bf16 %v1173
        %v1222 = vunpack.c.l.s8.bf16 %v1174
        %v1223 = vunpack.c.h.s8.bf16 %v1173
        %v1224 = vunpack.c.h.s8.bf16 %v1174
        %v1225 = vunpack.c.l.s8.bf16 %v1175
        %v1226 = vunpack.c.l.s8.bf16 %v1176
        %v1227 = vunpack.c.h.s8.bf16 %v1175
        %v1228 = vunpack.c.h.s8.bf16 %v1176
        %v1229 = vunpack.c.l.s8.bf16 %v1177
        %v1230 = vunpack.c.l.s8.bf16 %v1178
        %v1231 = vunpack.c.h.s8.bf16 %v1177
        %v1232 = vunpack.c.h.s8.bf16 %v1178
        %v1233 = vunpack.c.l.s8.bf16 %v1179
        %v1234 = vunpack.c.l.s8.bf16 %v1180
        %v1235 = vunpack.c.h.s8.bf16 %v1179
        %v1236 = vunpack.c.h.s8.bf16 %v1180
        %v1237 = vunpack.c.l.s8.bf16 %v1181
        %v1238 = vunpack.c.l.s8.bf16 %v1182
        %v1239 = vunpack.c.h.s8.bf16 %v1181
        %v1240 = vunpack.c.h.s8.bf16 %v1182
        %v1241 = vunpack.c.l.s8.bf16 %v1183
        %v1242 = vunpack.c.l.s8.bf16 %v1184
        %v1243 = vunpack.c.h.s8.bf16 %v1183
        %v1244 = vunpack.c.h.s8.bf16 %v1184
        %v1245 = vunpack.c.l.s8.bf16 %v1185
        %v1246 = vunpack.c.l.s8.bf16 %v1186
        %v1247 = vunpack.c.h.s8.bf16 %v1185
        %v1248 = vunpack.c.h.s8.bf16 %v1186
        %v1249 = vunpack.c.l.s8.bf16 %v1187
        %v1250 = vunpack.c.l.s8.bf16 %v1188
        %v1251 = vunpack.c.h.s8.bf16 %v1187
        %v1252 = vunpack.c.h.s8.bf16 %v1188
        %1253 = vmatprep.subr.bf16.mxu0 %v1190
        %1254 = vmatpush1.bf16.msra.mxu0 %v1189
        %1255 = vmatprep.subr.bf16.mxu0 %v1192
        %1256 = vmatpush1.bf16.msra.mxu0 %v1191
        %1257 = vmatprep.subr.bf16.mxu0 %v1194
        %1258 = vmatpush1.bf16.msra.mxu0 %v1193
        %1259 = vmatprep.subr.bf16.mxu0 %v1196
        %1260 = vmatpush1.bf16.msra.mxu0 %v1195
        %1261 = vmatprep.subr.bf16.mxu0 %v1198
        %1262 = vmatpush1.bf16.msra.mxu0 %v1197
        %1263 = vmatprep.subr.bf16.mxu0 %v1200
        %1264 = vmatpush1.bf16.msra.mxu0 %v1199
        %1265 = vmatprep.subr.bf16.mxu0 %v1202
        %1266 = vmatpush1.bf16.msra.mxu0 %v1201
        %1267 = vmatprep.subr.bf16.mxu0 %v1204
        %1268 = vmatpush1.bf16.msra.mxu0 %v1203
        %1269 = vmatprep.subr.bf16.mxu0 %v1206
        %1270 = vmatpush1.bf16.msra.mxu0 %v1205
        %1271 = vmatprep.subr.bf16.mxu0 %v1208
        %1272 = vmatpush1.bf16.msra.mxu0 %v1207
        %1273 = vmatprep.subr.bf16.mxu0 %v1210
        %1274 = vmatpush1.bf16.msra.mxu0 %v1209
        %1275 = vmatprep.subr.bf16.mxu0 %v1212
        %1276 = vmatpush1.bf16.msra.mxu0 %v1211
        %1277 = vmatprep.subr.bf16.mxu0 %v1214
        %1278 = vmatpush1.bf16.msra.mxu0 %v1213
        %1279 = vmatprep.subr.bf16.mxu0 %v1216
        %1280 = vmatpush1.bf16.msra.mxu0 %v1215
        %1281 = vmatprep.subr.bf16.mxu0 %v1218
        %1282 = vmatpush1.bf16.msra.mxu0 %v1217
        %1283 = vmatprep.subr.bf16.mxu0 %v1220
        %1284 = vmatpush1.bf16.msra.mxu0 %v1219
        %1285 = vmatprep.mubr.bf16.mxu0 %v1154
        %1286 = vmatmul.mubr.bf16.gmra.mrb[0].mxu0 %v1153
        %v1287 = vpop.f32.mrb[0].mxu0
        %v1288 = vadd.f32 0.0, %v1287
        %v1289 = vpop.f32.mrb[0].mxu0
        %v1290 = vadd.f32 0.0, %v1289
        %v1291 = vpop.f32.mrb[0].mxu0
        %v1292 = vpop.f32.mrb[0].mxu0
        %1293 = vdwg.mxu0
        %1294 = vmatprep.subr.bf16.mxu0 %v1222
        %1295 = vmatpush1.bf16.msra.mxu0 %v1221
        %1296 = vmatprep.subr.bf16.mxu0 %v1224
        %1297 = vmatpush1.bf16.msra.mxu0 %v1223
        %1298 = vmatprep.subr.bf16.mxu0 %v1226
        %1299 = vmatpush1.bf16.msra.mxu0 %v1225
        %1300 = vmatprep.subr.bf16.mxu0 %v1228
        %1301 = vmatpush1.bf16.msra.mxu0 %v1227
        %1302 = vmatprep.subr.bf16.mxu0 %v1230
        %1303 = vmatpush1.bf16.msra.mxu0 %v1229
        %1304 = vmatprep.subr.bf16.mxu0 %v1232
        %1305 = vmatpush1.bf16.msra.mxu0 %v1231
        %1306 = vmatprep.subr.bf16.mxu0 %v1234
        %1307 = vmatpush1.bf16.msra.mxu0 %v1233
        %1308 = vmatprep.subr.bf16.mxu0 %v1236
        %1309 = vmatpush1.bf16.msra.mxu0 %v1235
        %1310 = vmatprep.subr.bf16.mxu0 %v1238
        %1311 = vmatpush1.bf16.msra.mxu0 %v1237
        %1312 = vmatprep.subr.bf16.mxu0 %v1240
        %1313 = vmatpush1.bf16.msra.mxu0 %v1239
        %1314 = vmatprep.subr.bf16.mxu0 %v1242
        %1315 = vmatpush1.bf16.msra.mxu0 %v1241
        %1316 = vmatprep.subr.bf16.mxu0 %v1244
        %1317 = vmatpush1.bf16.msra.mxu0 %v1243
        %1318 = vmatprep.subr.bf16.mxu0 %v1246
        %1319 = vmatpush1.bf16.msra.mxu0 %v1245
        %1320 = vmatprep.subr.bf16.mxu0 %v1248
        %1321 = vmatpush1.bf16.msra.mxu0 %v1247
        %1322 = vmatprep.subr.bf16.mxu0 %v1250
        %1323 = vmatpush1.bf16.msra.mxu0 %v1249
        %1324 = vmatprep.subr.bf16.mxu0 %v1252
        %1325 = vmatpush1.bf16.msra.mxu0 %v1251
        %1326 = vmatprep.mubr.bf16.mxu0 %v1156
        %1327 = vmatmul.mubr.bf16.gmra.mrb[0].mxu0 %v1155
        %v1328 = vpop.f32.mrb[0].mxu0
        %v1329 = vadd.f32 %v1288, %v1328
        %v1330 = vpop.f32.mrb[0].mxu0
        %v1331 = vadd.f32 %v1290, %v1330
        %v1332 = vpop.f32.mrb[0].mxu0
        %v1333 = vpop.f32.mrb[0].mxu0
        %1334 = vdwg.mxu0
        %v1335 = vlaneseq
        %v1336 = vshrl.u32 %v1335, 7
        %v1337 = vsub.s32 2, %v1336
        %v1338 = vrot.slane %v315, %v1337
        %v1339 = vlaneseq
        %v1340 = vshrl.u32 %v1339, 7
        %v1341 = vsub.s32 2, %v1340
        %v1342 = vrot.slane %v316, %v1341
        %v1343 = vmul.f32 %v1329, %v1338
        %v1344 = vmul.f32 %v1331, %v1342
        %v1345 = vlaneseq
        %v1346 = vshrl.u32 %v1345, 7
        %v1347 = vsub.s32 3, %v1346
        %v1348 = vrot.slane %v315, %v1347
        %v1349 = vlaneseq
        %v1350 = vshrl.u32 %v1349, 7
        %v1351 = vsub.s32 3, %v1350
        %v1352 = vrot.slane %v316, %v1351
        %v1353 = vadd.f32 %v1343, %v1348
        %v1354 = vadd.f32 %v1344, %v1352
        %v1355 = vmax.f32 %v1353, 0.0
        %v1356 = vmax.f32 %v1354, 0.0
        %v1357 = vpack.c.bf16 %v1355, %v1355
        %v1358 = vpack.c.bf16 %v1356, %v1356
        %v1359 = vld [vmem:[%s255 + $0x400] sm:$0xff]
        %v1360 = vld [vmem:[%s255 + $0x408] sm:$0xff]
        %v1361 = vld [vmem:[%s255 + $0x410] sm:$0xff]
        %v1362 = vld [vmem:[%s255 + $0x418] sm:$0xff]
        %v1363 = vld [vmem:[%s255 + $0x420] sm:$0xff]
        %v1364 = vld [vmem:[%s255 + $0x428] sm:$0xff]
        %v1365 = vld [vmem:[%s255 + $0x430] sm:$0xff]
        %v1366 = vld [vmem:[%s255 + $0x438] sm:$0xff]
        %v1367 = vld [vmem:[%s255 + $0x440] sm:$0xff]
        %v1368 = vld [vmem:[%s255 + $0x448] sm:$0xff]
        %v1369 = vld [vmem:[%s255 + $0x450] sm:$0xff]
        %v1370 = vld [vmem:[%s255 + $0x458] sm:$0xff]
        %v1371 = vld [vmem:[%s255 + $0x460] sm:$0xff]
        %v1372 = vld [vmem:[%s255 + $0x468] sm:$0xff]
        %v1373 = vld [vmem:[%s255 + $0x470] sm:$0xff]
        %v1374 = vld [vmem:[%s255 + $0x478] sm:$0xff]
        %v1375 = vunpack.c.l.s8.bf16 %v1359
        %v1376 = vunpack.c.l.s8.bf16 %v1360
        %v1377 = vunpack.c.h.s8.bf16 %v1359
        %v1378 = vunpack.c.h.s8.bf16 %v1360
        %v1379 = vunpack.c.l.s8.bf16 %v1361
        %v1380 = vunpack.c.l.s8.bf16 %v1362
        %v1381 = vunpack.c.h.s8.bf16 %v1361
        %v1382 = vunpack.c.h.s8.bf16 %v1362
        %v1383 = vunpack.c.l.s8.bf16 %v1363
        %v1384 = vunpack.c.l.s8.bf16 %v1364
        %v1385 = vunpack.c.h.s8.bf16 %v1363
        %v1386 = vunpack.c.h.s8.bf16 %v1364
        %v1387 = vunpack.c.l.s8.bf16 %v1365
        %v1388 = vunpack.c.l.s8.bf16 %v1366
        %v1389 = vunpack.c.h.s8.bf16 %v1365
        %v1390 = vunpack.c.h.s8.bf16 %v1366
        %v1391 = vunpack.c.l.s8.bf16 %v1367
        %v1392 = vunpack.c.l.s8.bf16 %v1368
        %v1393 = vunpack.c.h.s8.bf16 %v1367
        %v1394 = vunpack.c.h.s8.bf16 %v1368
        %v1395 = vunpack.c.l.s8.bf16 %v1369
        %v1396 = vunpack.c.l.s8.bf16 %v1370
        %v1397 = vunpack.c.h.s8.bf16 %v1369
        %v1398 = vunpack.c.h.s8.bf16 %v1370
        %v1399 = vunpack.c.l.s8.bf16 %v1371
        %v1400 = vunpack.c.l.s8.bf16 %v1372
        %v1401 = vunpack.c.h.s8.bf16 %v1371
        %v1402 = vunpack.c.h.s8.bf16 %v1372
        %v1403 = vunpack.c.l.s8.bf16 %v1373
        %v1404 = vunpack.c.l.s8.bf16 %v1374
        %v1405 = vunpack.c.h.s8.bf16 %v1373
        %v1406 = vunpack.c.h.s8.bf16 %v1374
        %1407 = vmatprep.subr.bf16.mxu0 %v1376
        %1408 = vmatpush1.bf16.msra.mxu0 %v1375
        %1409 = vmatprep.subr.bf16.mxu0 %v1378
        %1410 = vmatpush1.bf16.msra.mxu0 %v1377
        %1411 = vmatprep.subr.bf16.mxu0 %v1380
        %1412 = vmatpush1.bf16.msra.mxu0 %v1379
        %1413 = vmatprep.subr.bf16.mxu0 %v1382
        %1414 = vmatpush1.bf16.msra.mxu0 %v1381
        %1415 = vmatprep.subr.bf16.mxu0 %v1384
        %1416 = vmatpush1.bf16.msra.mxu0 %v1383
        %1417 = vmatprep.subr.bf16.mxu0 %v1386
        %1418 = vmatpush1.bf16.msra.mxu0 %v1385
        %1419 = vmatprep.subr.bf16.mxu0 %v1388
        %1420 = vmatpush1.bf16.msra.mxu0 %v1387
        %1421 = vmatprep.subr.bf16.mxu0 %v1390
        %1422 = vmatpush1.bf16.msra.mxu0 %v1389
        %1423 = vmatprep.subr.bf16.mxu0 %v1392
        %1424 = vmatpush1.bf16.msra.mxu0 %v1391
        %1425 = vmatprep.subr.bf16.mxu0 %v1394
        %1426 = vmatpush1.bf16.msra.mxu0 %v1393
        %1427 = vmatprep.subr.bf16.mxu0 %v1396
        %1428 = vmatpush1.bf16.msra.mxu0 %v1395
        %1429 = vmatprep.subr.bf16.mxu0 %v1398
        %1430 = vmatpush1.bf16.msra.mxu0 %v1397
        %1431 = vmatprep.subr.bf16.mxu0 %v1400
        %1432 = vmatpush1.bf16.msra.mxu0 %v1399
        %1433 = vmatprep.subr.bf16.mxu0 %v1402
        %1434 = vmatpush1.bf16.msra.mxu0 %v1401
        %1435 = vmatprep.subr.bf16.mxu0 %v1404
        %1436 = vmatpush1.bf16.msra.mxu0 %v1403
        %1437 = vmatprep.subr.bf16.mxu0 %v1406
        %1438 = vmatpush1.bf16.msra.mxu0 %v1405
        %1439 = vmatprep.mubr.bf16.mxu0 %v1358
        %1440 = vmatmul.mubr.bf16.gmra.mrb[0].mxu0 %v1357
        %v1441 = vpop.f32.mrb[0].mxu0
        %v1442 = vadd.f32 0.0, %v1441
        %v1443 = vpop.f32.mrb[0].mxu0
        %v1444 = vadd.f32 0.0, %v1443
        %v1445 = vpop.f32.mrb[0].mxu0
        %v1446 = vpop.f32.mrb[0].mxu0
        %1447 = vdwg.mxu0
        %v1448 = vlaneseq
        %v1449 = vshrl.u32 %v1448, 7
        %v1450 = vsub.s32 2, %v1449
        %v1451 = vrot.slane %v317, %v1450
        %v1452 = vlaneseq
        %v1453 = vshrl.u32 %v1452, 7
        %v1454 = vsub.s32 2, %v1453
        %v1455 = vrot.slane %v318, %v1454
        %v1456 = vmul.f32 %v1442, %v1451
        %v1457 = vmul.f32 %v1444, %v1455
        %v1458 = vlaneseq
        %v1459 = vshrl.u32 %v1458, 7
        %v1460 = vsub.s32 3, %v1459
        %v1461 = vrot.slane %v317, %v1460
        %v1462 = vlaneseq
        %v1463 = vshrl.u32 %v1462, 7
        %v1464 = vsub.s32 3, %v1463
        %v1465 = vrot.slane %v318, %v1464
        %v1466 = vadd.f32 %v1456, %v1461
        %v1467 = vadd.f32 %v1457, %v1465
        %v1468 = vmax.f32 %v1466, 0.0
        %v1469 = vmax.f32 %v1467, 0.0
        %v1470 = vpack.c.bf16 %v1468, %v1468
        %v1471 = vpack.c.bf16 %v1469, %v1469
        %v1472 = vld [vmem:[%s308] sm:$0xf]
        %v1473 = vld [vmem:[%s308 + $0x4] sm:$0xf]
        %v1474 = vld [vmem:[%s308 + $0x8] sm:$0xf]
        %v1475 = vld [vmem:[%s308 + $0xc] sm:$0xf]
        %v1476 = vld [vmem:[%s308 + $0x10] sm:$0xf]
        %v1477 = vld [vmem:[%s308 + $0x14] sm:$0xf]
        %v1478 = vld [vmem:[%s308 + $0x18] sm:$0xf]
        %v1479 = vld [vmem:[%s308 + $0x1c] sm:$0xf]
        %v1480 = vld [vmem:[%s308 + $0x20] sm:$0xf]
        %v1481 = vld [vmem:[%s308 + $0x24] sm:$0xf]
        %v1482 = vld [vmem:[%s308 + $0x28] sm:$0xf]
        %v1483 = vld [vmem:[%s308 + $0x2c] sm:$0xf]
        %v1484 = vld [vmem:[%s308 + $0x30] sm:$0xf]
        %v1485 = vld [vmem:[%s308 + $0x34] sm:$0xf]
        %v1486 = vld [vmem:[%s308 + $0x38] sm:$0xf]
        %v1487 = vld [vmem:[%s308 + $0x3c] sm:$0xf]
        %v1488 = vld [vmem:[%s308 + $0x40] sm:$0xf]
        %v1489 = vld [vmem:[%s308 + $0x44] sm:$0xf]
        %v1490 = vld [vmem:[%s308 + $0x48] sm:$0xf]
        %v1491 = vld [vmem:[%s308 + $0x4c] sm:$0xf]
        %v1492 = vld [vmem:[%s308 + $0x50] sm:$0xf]
        %v1493 = vld [vmem:[%s308 + $0x54] sm:$0xf]
        %v1494 = vld [vmem:[%s308 + $0x58] sm:$0xf]
        %v1495 = vld [vmem:[%s308 + $0x5c] sm:$0xf]
        %v1496 = vld [vmem:[%s308 + $0x60] sm:$0xf]
        %v1497 = vld [vmem:[%s308 + $0x64] sm:$0xf]
        %v1498 = vld [vmem:[%s308 + $0x68] sm:$0xf]
        %v1499 = vld [vmem:[%s308 + $0x6c] sm:$0xf]
        %v1500 = vld [vmem:[%s308 + $0x70] sm:$0xf]
        %v1501 = vld [vmem:[%s308 + $0x74] sm:$0xf]
        %v1502 = vld [vmem:[%s308 + $0x78] sm:$0xf]
        %v1503 = vld [vmem:[%s308 + $0x7c] sm:$0xf]
        %v1504 = vlaneseq
        %v1505 = vshrl.u32 %v1504, 7
        %v1506 = vsub.s32 4, %v1505
        %v1507 = vrot.slane %v315, %v1506
        %v1540 = vunpack.c.l.b16 %v1472
        %v1541 = vunpack.c.l.b16 %v1473
        %v1542 = vunpack.c.l.b16 %v1474
        %v1543 = vunpack.c.l.b16 %v1475
        %v1544 = vunpack.c.l.b16 %v1476
        %v1545 = vunpack.c.l.b16 %v1477
        %v1546 = vunpack.c.l.b16 %v1478
        %v1547 = vunpack.c.l.b16 %v1479
        %v1548 = vunpack.c.l.b16 %v1480
        %v1549 = vunpack.c.l.b16 %v1481
        %v1550 = vunpack.c.l.b16 %v1482
        %v1551 = vunpack.c.l.b16 %v1483
        %v1552 = vunpack.c.l.b16 %v1484
        %v1553 = vunpack.c.l.b16 %v1485
        %v1554 = vunpack.c.l.b16 %v1486
        %v1555 = vunpack.c.l.b16 %v1487
        %v1556 = vunpack.c.l.b16 %v1488
        %v1557 = vunpack.c.l.b16 %v1489
        %v1558 = vunpack.c.l.b16 %v1490
        %v1559 = vunpack.c.l.b16 %v1491
        %v1560 = vunpack.c.l.b16 %v1492
        %v1561 = vunpack.c.l.b16 %v1493
        %v1562 = vunpack.c.l.b16 %v1494
        %v1563 = vunpack.c.l.b16 %v1495
        %v1564 = vunpack.c.l.b16 %v1496
        %v1565 = vunpack.c.l.b16 %v1497
        %v1566 = vunpack.c.l.b16 %v1498
        %v1567 = vunpack.c.l.b16 %v1499
        %v1568 = vunpack.c.l.b16 %v1500
        %v1569 = vunpack.c.l.b16 %v1501
        %v1570 = vunpack.c.l.b16 %v1502
        %v1571 = vunpack.c.l.b16 %v1503
        %v1572 = vpack.c.b16 %v1541, %v1540
        %v1573 = vpack.c.b16 %v1543, %v1542
        %v1574 = vpack.c.b16 %v1545, %v1544
        %v1575 = vpack.c.b16 %v1547, %v1546
        %v1576 = vpack.c.b16 %v1549, %v1548
        %v1577 = vpack.c.b16 %v1551, %v1550
        %v1578 = vpack.c.b16 %v1553, %v1552
        %v1579 = vpack.c.b16 %v1555, %v1554
        %v1580 = vpack.c.b16 %v1557, %v1556
        %v1581 = vpack.c.b16 %v1559, %v1558
        %v1582 = vpack.c.b16 %v1561, %v1560
        %v1583 = vpack.c.b16 %v1563, %v1562
        %v1584 = vpack.c.b16 %v1565, %v1564
        %v1585 = vpack.c.b16 %v1567, %v1566
        %v1586 = vpack.c.b16 %v1569, %v1568
        %v1587 = vpack.c.b16 %v1571, %v1570
        %1604 = vmatprep.subr.bf16.mxu0 0
        %1605 = vmatpush1.bf16.msra.mxu0 %v1572
        %1606 = vmatprep.subr.bf16.mxu0 0
        %1607 = vmatpush1.bf16.msra.mxu0 %v1573
        %1608 = vmatprep.subr.bf16.mxu0 0
        %1609 = vmatpush1.bf16.msra.mxu0 %v1574
        %1610 = vmatprep.subr.bf16.mxu0 0
        %1611 = vmatpush1.bf16.msra.mxu0 %v1575
        %1612 = vmatprep.subr.bf16.mxu0 0
        %1613 = vmatpush1.bf16.msra.mxu0 %v1576
        %1614 = vmatprep.subr.bf16.mxu0 0
        %1615 = vmatpush1.bf16.msra.mxu0 %v1577
        %1616 = vmatprep.subr.bf16.mxu0 0
        %1617 = vmatpush1.bf16.msra.mxu0 %v1578
        %1618 = vmatprep.subr.bf16.mxu0 0
        %1619 = vmatpush1.bf16.msra.mxu0 %v1579
        %1620 = vmatprep.subr.bf16.mxu0 0
        %1621 = vmatpush1.bf16.msra.mxu0 %v1580
        %1622 = vmatprep.subr.bf16.mxu0 0
        %1623 = vmatpush1.bf16.msra.mxu0 %v1581
        %1624 = vmatprep.subr.bf16.mxu0 0
        %1625 = vmatpush1.bf16.msra.mxu0 %v1582
        %1626 = vmatprep.subr.bf16.mxu0 0
        %1627 = vmatpush1.bf16.msra.mxu0 %v1583
        %1628 = vmatprep.subr.bf16.mxu0 0
        %1629 = vmatpush1.bf16.msra.mxu0 %v1584
        %1630 = vmatprep.subr.bf16.mxu0 0
        %1631 = vmatpush1.bf16.msra.mxu0 %v1585
        %1632 = vmatprep.subr.bf16.mxu0 0
        %1633 = vmatpush1.bf16.msra.mxu0 %v1586
        %1634 = vmatprep.subr.bf16.mxu0 0
        %1635 = vmatpush1.bf16.msra.mxu0 %v1587
        %1636 = vmatprep.mubr.bf16.mxu0 %v1471
        %1637 = vmatmul.mubr.bf16.gmra.mrb[0].mxu0 %v1470
        %v1638 = vpop.f32.mrb[0].mxu0
        %v1639 = vadd.f32 %v1507, %v1638
        %v1640 = vpop.f32.mrb[0].mxu0
        %v1641 = vpop.f32.mrb[0].mxu0
        %v1642 = vpop.f32.mrb[0].mxu0
        %1643 = vdwg.mxu0
        %1644 = vst [vmem:[%s312] sm:$0x3] 0.0
        %vm1645 = vcmask 58368
        %1646 = vst.msk [vmem:[%s312] sm:$0x3] %vm1645, %v1639
        %p1647 = scmp.lt.s32.totalorder %s20, 1
        %s1648 = scalar_select %p1647, %s20, 1
        %s1649 = smul.addr %s1648, 2
        %s1650 = scalar_lea.vmem %s5, %s1649
        // Predicated region
        $region53: #{double_direct_forward.1} parent=39 // pred_check
          %p1651 = pneg %p158
        $region54: #{double_direct_forward.1} parent=39 // pred_check_branch
          %1653 = sbr.rel (%p1651) target = $region56
        $region55: #{double_direct_forward.1} parent=39 // pred_region
          _
        $region56: #{double_direct_forward.1} parent=39 // pred_fallthru
          _
      $region40: #{double_direct_forward.1} parent=5 // pred_fallthru
        _
      %p1654 = scmp.le.s32.totalorder 2, %s15
      // Predicated region
      $region57: #{double_direct_forward.1} parent=5 // pred_check
        %p1655 = pneg %p1654
      $region58: #{double_direct_forward.1} parent=5 // pred_check_branch
        %1657 = sbr.rel (%p1655) target = $region60
      $region59: #{double_direct_forward.1} parent=5 // pred_region
        %s1658 = ssub.s32 %s15, 2
        // Predicated region
        $region61: #{double_direct_forward.1} parent=59 // pred_check
          %p1659 = pneg %p164
        $region62: #{double_direct_forward.1} parent=59 // pred_check_branch
          %1661 = sbr.rel (%p1659) target = $region64
        $region63: #{double_direct_forward.1} parent=59 // pred_region
          %p1662 = scmp.lt.s32.totalorder %s21, 1
          %s1663 = scalar_select %p1662, %s21, 1
          %s1664 = smul.addr %s1663, 2
          %s1665 = scalar_lea.vmem %s5, %s1664
        $region64: #{double_direct_forward.1} parent=59 // pred_fallthru
          _
      $region60: #{double_direct_forward.1} parent=5 // pred_fallthru
        _
    $region6: #{double_direct_forward.1} parent=1 // loop_footer
      %s19 = sadd.s32 1, %s15
    $region7: #{double_direct_forward.1} parent=1 // loop_footer_branch
      %14 = sbr.rel target = $region3
    $region8: #{double_direct_forward.1} parent=1 // loop_exit
      _
    %1666 = vsyncpa [#allocation3], 1
    %s1667 = scalar_lea.sflag [#allocation3], 1
    %1668 = vsyncpa %s1667, 1
    %1669 = vsyncpa [#allocation5], 1

</llo_original>
